<compile_context>
chip_gen: v5e
topology: v5e:2x2
jax: 0.10.0
libtpu: 0.0.40
codegen_flags: <defaults>
</compile_context>

<pallas_src>
import jax
import jax.numpy as jnp
from jax import lax
from jax.experimental import pallas as pl
from jax.experimental.pallas import tpu as pltpu

BN_EPS = 1e-5


def _mod(a, m):
    """a % m for int32 vectors; bitwise when m is a power of two (cheap/safe)."""
    if m & (m - 1) == 0:
        return jnp.bitwise_and(a, m - 1)
    return a % m


def _div(a, m):
    """a // m for int32 vectors; shift when m is a power of two."""
    if m & (m - 1) == 0:
        return jnp.right_shift(a, m.bit_length() - 1)
    return a // m


# ----------------------------------------------------------------------------
# Fused Downsample_block forward
# ----------------------------------------------------------------------------
def downsample_block(x_nchw, params):
    """Forward of the PyTorch Downsample_block.  Returns (pooled, y) in NCHW."""
    N, Cin, H, W = x_nchw.shape
    C1 = params["w1"].shape[-1]
    C2 = params["w2"].shape[-1]
    Hp, Wp = H // 2, W // 2
    HW = H * W
    L = N * HW                     # flat lane axis: n-major, then h, then w
    inv_count = 1.0 / float(L)

    # Free (metadata-only) reshape of the input; tiny weight transposes only.
    x_flat = x_nchw.astype(jnp.float32).reshape(N, Cin, HW)
    # (3,3,Cin,Cout) HWIO -> (Cout, 9*Cin); column index = ky*3*Cin + kx*Cin + ci
    w1_t = params["w1"].transpose(3, 0, 1, 2).reshape(C1, 9 * Cin).astype(jnp.float32)
    w2_t = params["w2"].transpose(3, 0, 1, 2).reshape(C2, 9 * C1).astype(jnp.float32)
    g1 = params["g1"].reshape(C1, 1).astype(jnp.float32)
    be1 = params["be1"].reshape(C1, 1).astype(jnp.float32)
    g2 = params["g2"].reshape(C2, 1).astype(jnp.float32)
    be2 = params["be2"].reshape(C2, 1).astype(jnp.float32)
    # NOTE: conv biases b1/b2 are NOT passed -- training-mode BN mean
    # subtraction cancels a constant per-channel bias exactly.

    def kernel(x_ref, w1_ref, g1_ref, be1_ref, w2_ref, g2_ref, be2_ref,
               pooled_ref, y_ref):
        # ---- channel-major, batch-flattened activation: (Cin, N*H*W) --------
        if N == 1:
            xin = x_ref[0]
        else:
            xin = jnp.concatenate([x_ref[n] for n in range(N)], axis=-1)

        # ---- border masks for the 9 conv taps (computed once, reused) -------
        flat = lax.broadcasted_iota(jnp.int32, (1, L), 1)
        col = _mod(flat, W)
        row = _mod(_div(flat, W), H)
        row_m = {0: row >= 1, 1: None, 2: row <= H - 2}
        col_m = {0: col >= 1, 1: None, 2: col <= W - 2}

        def conv3x3(act, w_t):
            """One 3x3 'same' conv as a single K=9*Cin MXU contraction.

            act: (Cin, L) channel-major; w_t: (Cout, 9*Cin).  Taps are built
            with lane rolls + border masks; any roll wrap-around or
            cross-image read lands exactly on a masked (zero-padded) position.
            """
            taps = []
            for ky in range(3):
                for kx in range(3):
                    off = (ky - 1) * W + (kx - 1)
                    t = act if off == 0 else pltpu.roll(
                        act, shift=(-off) % L, axis=1)
                    m = row_m[ky]
                    c = col_m[kx]
                    if m is None:
                        m = c
                    elif c is not None:
                        m = jnp.logical_and(m, c)
                    if m is not None:
                        t = jnp.where(m, t, 0.0)
                    taps.append(t)
            patches = jnp.concatenate(taps, axis=0)            # (9*Cin, L)
            return jnp.dot(w_t, patches,
                           preferred_element_type=jnp.float32)  # (Cout, L)

        def bn_relu(z, gamma, beta):
            """Training-mode BatchNorm (biased batch stats, single pass) + ReLU."""
            s = jnp.sum(z, axis=1, keepdims=True)              # (C, 1)
            ss = jnp.sum(z * z, axis=1, keepdims=True)
            mean = s * inv_count
            var = ss * inv_count - mean * mean
            scale = gamma * lax.rsqrt(var + BN_EPS)
            shift = beta - mean * scale
            return jnp.maximum(z * scale + shift, 0.0)

        # ---- stage 1 and stage 2 (each: one matmul + one BN pass) -----------
        a1 = bn_relu(conv3x3(xin, w1_ref[...]), g1_ref[...], be1_ref[...])
        y = bn_relu(conv3x3(a1, w2_ref[...]), g2_ref[...], be2_ref[...])

        # ---- y output: lane-dense (C2, H*W) stores, no transposes -----------
        for n in range(N):
            y_ref[n] = y[:, n * HW:(n + 1) * HW]

        # ---- 2x2/2 maxpool (tiny; uses the previously-validated op mix) -----
        for n in range(N):
            yt = y[:, n * HW:(n + 1) * HW].T                   # (H*W, C2)
            r = jnp.max(yt.reshape(Hp, 2, W, C2), axis=1)      # vertical pairs
            p = jnp.max(r.reshape(Hp, Wp, 2, C2), axis=2)      # horizontal pairs
            pooled_ref[n] = p.reshape(Hp * Wp, C2).T           # (C2, Hp*Wp)

    vmem = pl.BlockSpec(memory_space=pltpu.MemorySpace.VMEM)
    pooled_flat, y_flat = pl.pallas_call(
        kernel,
        out_shape=(jax.ShapeDtypeStruct((N, C2, Hp * Wp), jnp.float32),
                   jax.ShapeDtypeStruct((N, C2, HW), jnp.float32)),
        in_specs=[vmem] * 7,
        out_specs=(vmem, vmem),
    )(x_flat, w1_t, g1, be1, w2_t, g2, be2)

    # Free reshapes back to PyTorch's NCHW output shapes.
    return (pooled_flat.reshape(N, C2, Hp, Wp),
            y_flat.reshape(N, C2, H, W))


# ----------------------------------------------------------------------------
# Deterministic parameter init (shapes from nn.Conv2d / nn.BatchNorm2d)
# Conv weights stored as (3, 3, Cin, Cout) (HWIO).
# ----------------------------------------------------------------------------
def init_params(key, cin, cout):
    k = jax.random.split(key, 4)
    bound1 = 1.0 / (cin * 9) ** 0.5
    bound2 = 1.0 / (cout * 9) ** 0.5
    return dict(
        w1=jax.random.uniform(k[0], (3, 3, cin, cout), jnp.float32, -bound1, bound1),
        b1=jax.random.uniform(k[1], (1, cout), jnp.float32, -bound1, bound1),
        w2=jax.random.uniform(k[2], (3, 3, cout, cout), jnp.float32, -bound2, bound2),
        b2=jax.random.uniform(k[3], (1, cout), jnp.float32, -bound2, bound2),
        g1=jnp.ones((cout,), jnp.float32), be1=jnp.zeros((cout,), jnp.float32),
        g2=jnp.ones((cout,), jnp.float32), be2=jnp.zeros((cout,), jnp.float32),
    )


# ----------------------------------------------------------------------------
# Pure-JAX reference (correctness check only; keeps the conv biases)
# ----------------------------------------------------------------------------
def reference(x_nchw, p):
    def conv(x, w, b):
        out = lax.conv_general_dilated(
            x, w, (1, 1), ((1, 1), (1, 1)),
            dimension_numbers=("NCHW", "HWIO", "NCHW"),
            precision=lax.Precision.HIGHEST)
        return out + b.reshape(1, -1, 1, 1)

    def bn_relu(x, gamma, beta):
        mean = jnp.mean(x, axis=(0, 2, 3), keepdims=True)
        var = jnp.var(x, axis=(0, 2, 3), keepdims=True)
        xn = (x - mean) / jnp.sqrt(var + BN_EPS)
        return jnp.maximum(xn * gamma.reshape(1, -1, 1, 1)
                           + beta.reshape(1, -1, 1, 1), 0.0)

    a1 = bn_relu(conv(x_nchw, p["w1"], p["b1"][0]), p["g1"], p["be1"])
    y = bn_relu(conv(a1, p["w2"], p["b2"][0]), p["g2"], p["be2"])
    pooled = lax.reduce_window(y, -jnp.inf, lax.max,
                               (1, 1, 2, 2), (1, 1, 2, 2), "VALID")
    return pooled, y


if __name__ == "__main__":
    key = jax.random.PRNGKey(0)
    kx, kp = jax.random.split(key)
    N, Cin, Cout, H, W = 2, 4, 8, 16, 16

    x = jax.random.normal(kx, (N, Cin, H, W), jnp.float32)
    params = init_params(kp, Cin, Cout)

    fwd = jax.jit(downsample_block)
    pooled, y = fwd(x, params)
    jax.block_until_ready((pooled, y))

    ref_pooled, ref_y = reference(x, params)
    assert pooled.shape == (N, Cout, H // 2, W // 2), pooled.shape
    assert y.shape == (N, Cout, H, W), y.shape
    assert jnp.allclose(pooled, ref_pooled, atol=2e-3, rtol=2e-3)
    assert jnp.allclose(y, ref_y, atol=2e-3, rtol=2e-3)

    print("KERNEL_OK")
</pallas_src>

<mosaic_0001>
module attributes {stable_mosaic.version = 11 : i64} {
  func.func @kernel(%arg0: memref<2x4x256xf32, #tpu.memory_space<vmem>>, %arg1: memref<8x36xf32, #tpu.memory_space<vmem>>, %arg2: memref<8x1xf32, #tpu.memory_space<vmem>>, %arg3: memref<8x1xf32, #tpu.memory_space<vmem>>, %arg4: memref<8x72xf32, #tpu.memory_space<vmem>>, %arg5: memref<8x1xf32, #tpu.memory_space<vmem>>, %arg6: memref<8x1xf32, #tpu.memory_space<vmem>>, %arg7: memref<2x8x64xf32, #tpu.memory_space<vmem>>, %arg8: memref<2x8x256xf32, #tpu.memory_space<vmem>>) attributes {dimension_semantics = [], scalar_prefetch = 0 : i64, scratch_operands = 0 : i64, tpu.core_type = #tpu.core_type<tc>} {
    %c0 = arith.constant 0 : index
    %c0_0 = arith.constant 0 : index
    %c0_1 = arith.constant 0 : index
    %0 = vector.load %arg0[%c0, %c0_0, %c0_1] : memref<2x4x256xf32, #tpu.memory_space<vmem>>, vector<1x4x256xf32>
    %1 = vector.shape_cast %0 : vector<1x4x256xf32> to vector<4x256xf32>
    %c1 = arith.constant 1 : index
    %c0_2 = arith.constant 0 : index
    %c0_3 = arith.constant 0 : index
    %2 = vector.load %arg0[%c1, %c0_2, %c0_3] : memref<2x4x256xf32, #tpu.memory_space<vmem>>, vector<1x4x256xf32>
    %3 = vector.shape_cast %2 : vector<1x4x256xf32> to vector<4x256xf32>
    %4 = tpu.concatenate %1, %3 in 1 : vector<4x256xf32>, vector<4x256xf32> -> vector<4x512xf32>
    %5 = tpu.iota {dimensions = array<i32: 1>} : vector<1x512xi32>
    %c15_i32 = arith.constant 15 : i32
    %6 = vector.broadcast %c15_i32 : i32 to vector<1x512xi32>
    %7 = arith.andi %5, %6 : vector<1x512xi32>
    %c4_i32 = arith.constant 4 : i32
    %8 = vector.broadcast %c4_i32 : i32 to vector<1x512xi32>
    %9 = arith.shrsi %5, %8 : vector<1x512xi32>
    %c15_i32_4 = arith.constant 15 : i32
    %10 = vector.broadcast %c15_i32_4 : i32 to vector<1x512xi32>
    %11 = arith.andi %9, %10 : vector<1x512xi32>
    %c1_i32 = arith.constant 1 : i32
    %12 = vector.broadcast %c1_i32 : i32 to vector<1x512xi32>
    %13 = arith.cmpi sge, %11, %12 : vector<1x512xi32>
    %c14_i32 = arith.constant 14 : i32
    %14 = vector.broadcast %c14_i32 : i32 to vector<1x512xi32>
    %15 = arith.cmpi sle, %11, %14 : vector<1x512xi32>
    %c1_i32_5 = arith.constant 1 : i32
    %16 = vector.broadcast %c1_i32_5 : i32 to vector<1x512xi32>
    %17 = arith.cmpi sge, %7, %16 : vector<1x512xi32>
    %c14_i32_6 = arith.constant 14 : i32
    %18 = vector.broadcast %c14_i32_6 : i32 to vector<1x512xi32>
    %19 = arith.cmpi sle, %7, %18 : vector<1x512xi32>
    %c0_7 = arith.constant 0 : index
    %c0_8 = arith.constant 0 : index
    %20 = vector.load %arg1[%c0_7, %c0_8] : memref<8x36xf32, #tpu.memory_space<vmem>>, vector<8x36xf32>
    %c17_i32 = arith.constant 17 : i32
    %21 = tpu.dynamic_rotate %4 by %c17_i32 dim 1 : vector<4x512xf32>, i32 -> vector<4x512xf32>
    %22 = arith.andi %13, %17 : vector<1x512xi1>
    %cst = arith.constant 0.000000e+00 : f32
    %23 = vector.shape_cast %22 : vector<1x512xi1> to vector<1x512xi1>
    %24 = vector.broadcast %23 : vector<1x512xi1> to vector<4x512xi1>
    %25 = vector.broadcast %cst : f32 to vector<4x512xf32>
    %26 = arith.select %24, %21, %25 : vector<4x512xi1>, vector<4x512xf32>
    %c16_i32 = arith.constant 16 : i32
    %27 = tpu.dynamic_rotate %4 by %c16_i32 dim 1 : vector<4x512xf32>, i32 -> vector<4x512xf32>
    %cst_9 = arith.constant 0.000000e+00 : f32
    %28 = vector.shape_cast %13 : vector<1x512xi1> to vector<1x512xi1>
    %29 = vector.broadcast %28 : vector<1x512xi1> to vector<4x512xi1>
    %30 = vector.broadcast %cst_9 : f32 to vector<4x512xf32>
    %31 = arith.select %29, %27, %30 : vector<4x512xi1>, vector<4x512xf32>
    %c15_i32_10 = arith.constant 15 : i32
    %32 = tpu.dynamic_rotate %4 by %c15_i32_10 dim 1 : vector<4x512xf32>, i32 -> vector<4x512xf32>
    %33 = arith.andi %13, %19 : vector<1x512xi1>
    %cst_11 = arith.constant 0.000000e+00 : f32
    %34 = vector.shape_cast %33 : vector<1x512xi1> to vector<1x512xi1>
    %35 = vector.broadcast %34 : vector<1x512xi1> to vector<4x512xi1>
    %36 = vector.broadcast %cst_11 : f32 to vector<4x512xf32>
    %37 = arith.select %35, %32, %36 : vector<4x512xi1>, vector<4x512xf32>
    %c1_i32_12 = arith.constant 1 : i32
    %38 = tpu.dynamic_rotate %4 by %c1_i32_12 dim 1 : vector<4x512xf32>, i32 -> vector<4x512xf32>
    %cst_13 = arith.constant 0.000000e+00 : f32
    %39 = vector.shape_cast %17 : vector<1x512xi1> to vector<1x512xi1>
    %40 = vector.broadcast %39 : vector<1x512xi1> to vector<4x512xi1>
    %41 = vector.broadcast %cst_13 : f32 to vector<4x512xf32>
    %42 = arith.select %40, %38, %41 : vector<4x512xi1>, vector<4x512xf32>
    %c511_i32 = arith.constant 511 : i32
    %43 = tpu.dynamic_rotate %4 by %c511_i32 dim 1 : vector<4x512xf32>, i32 -> vector<4x512xf32>
    %cst_14 = arith.constant 0.000000e+00 : f32
    %44 = vector.shape_cast %19 : vector<1x512xi1> to vector<1x512xi1>
    %45 = vector.broadcast %44 : vector<1x512xi1> to vector<4x512xi1>
    %46 = vector.broadcast %cst_14 : f32 to vector<4x512xf32>
    %47 = arith.select %45, %43, %46 : vector<4x512xi1>, vector<4x512xf32>
    %c497_i32 = arith.constant 497 : i32
    %48 = tpu.dynamic_rotate %4 by %c497_i32 dim 1 : vector<4x512xf32>, i32 -> vector<4x512xf32>
    %49 = arith.andi %15, %17 : vector<1x512xi1>
    %cst_15 = arith.constant 0.000000e+00 : f32
    %50 = vector.shape_cast %49 : vector<1x512xi1> to vector<1x512xi1>
    %51 = vector.broadcast %50 : vector<1x512xi1> to vector<4x512xi1>
    %52 = vector.broadcast %cst_15 : f32 to vector<4x512xf32>
    %53 = arith.select %51, %48, %52 : vector<4x512xi1>, vector<4x512xf32>
    %c496_i32 = arith.constant 496 : i32
    %54 = tpu.dynamic_rotate %4 by %c496_i32 dim 1 : vector<4x512xf32>, i32 -> vector<4x512xf32>
    %cst_16 = arith.constant 0.000000e+00 : f32
    %55 = vector.shape_cast %15 : vector<1x512xi1> to vector<1x512xi1>
    %56 = vector.broadcast %55 : vector<1x512xi1> to vector<4x512xi1>
    %57 = vector.broadcast %cst_16 : f32 to vector<4x512xf32>
    %58 = arith.select %56, %54, %57 : vector<4x512xi1>, vector<4x512xf32>
    %c495_i32 = arith.constant 495 : i32
    %59 = tpu.dynamic_rotate %4 by %c495_i32 dim 1 : vector<4x512xf32>, i32 -> vector<4x512xf32>
    %60 = arith.andi %15, %19 : vector<1x512xi1>
    %cst_17 = arith.constant 0.000000e+00 : f32
    %61 = vector.shape_cast %60 : vector<1x512xi1> to vector<1x512xi1>
    %62 = vector.broadcast %61 : vector<1x512xi1> to vector<4x512xi1>
    %63 = vector.broadcast %cst_17 : f32 to vector<4x512xf32>
    %64 = arith.select %62, %59, %63 : vector<4x512xi1>, vector<4x512xf32>
    %65 = tpu.concatenate %26, %31, %37, %42, %4, %47, %53, %58, %64 in 0 : vector<4x512xf32>, vector<4x512xf32>, vector<4x512xf32>, vector<4x512xf32>, vector<4x512xf32>, vector<4x512xf32>, vector<4x512xf32>, vector<4x512xf32>, vector<4x512xf32> -> vector<36x512xf32>
    %cst_18 = arith.constant dense<0.000000e+00> : vector<8x512xf32>
    %66 = tpu.matmul %20, %65, %cst_18 {dimension_numbers = #tpu.dot_dimension_numbers<[1], [0], [0], [1], [0, 0, 1, 1], [], []>} : vector<8x36xf32>, vector<36x512xf32>, vector<8x512xf32> -> vector<8x512xf32>
    %c0_19 = arith.constant 0 : index
    %c0_20 = arith.constant 0 : index
    %67 = vector.load %arg2[%c0_19, %c0_20] : memref<8x1xf32, #tpu.memory_space<vmem>>, vector<8x1xf32>
    %c0_21 = arith.constant 0 : index
    %c0_22 = arith.constant 0 : index
    %68 = vector.load %arg3[%c0_21, %c0_22] : memref<8x1xf32, #tpu.memory_space<vmem>>, vector<8x1xf32>
    %cst_23 = arith.constant dense<0.000000e+00> : vector<8xf32>
    %69 = vector.multi_reduction <add>, %66, %cst_23 [1] : vector<8x512xf32> to vector<8xf32>
    %70 = vector.shape_cast %69 : vector<8xf32> to vector<8x1xf32>
    %71 = arith.mulf %66, %66 : vector<8x512xf32>
    %cst_24 = arith.constant dense<0.000000e+00> : vector<8xf32>
    %72 = vector.multi_reduction <add>, %71, %cst_24 [1] : vector<8x512xf32> to vector<8xf32>
    %73 = vector.shape_cast %72 : vector<8xf32> to vector<8x1xf32>
    %cst_25 = arith.constant 0.001953125 : f32
    %74 = vector.broadcast %cst_25 : f32 to vector<8x1xf32>
    %75 = arith.mulf %70, %74 : vector<8x1xf32>
    %cst_26 = arith.constant 0.001953125 : f32
    %76 = vector.broadcast %cst_26 : f32 to vector<8x1xf32>
    %77 = arith.mulf %73, %76 : vector<8x1xf32>
    %78 = arith.mulf %75, %75 : vector<8x1xf32>
    %79 = arith.subf %77, %78 : vector<8x1xf32>
    %cst_27 = arith.constant 9.99999974E-6 : f32
    %80 = vector.broadcast %cst_27 : f32 to vector<8x1xf32>
    %81 = arith.addf %79, %80 : vector<8x1xf32>
    %82 = math.rsqrt %81 : vector<8x1xf32>
    %83 = arith.mulf %67, %82 : vector<8x1xf32>
    %84 = arith.mulf %75, %83 : vector<8x1xf32>
    %85 = arith.subf %68, %84 : vector<8x1xf32>
    %86 = vector.broadcast %83 : vector<8x1xf32> to vector<8x512xf32>
    %87 = arith.mulf %66, %86 : vector<8x512xf32>
    %88 = vector.broadcast %85 : vector<8x1xf32> to vector<8x512xf32>
    %89 = arith.addf %87, %88 : vector<8x512xf32>
    %cst_28 = arith.constant 0.000000e+00 : f32
    %90 = vector.broadcast %cst_28 : f32 to vector<8x512xf32>
    %91 = arith.maximumf %89, %90 : vector<8x512xf32>
    %c0_29 = arith.constant 0 : index
    %c0_30 = arith.constant 0 : index
    %92 = vector.load %arg4[%c0_29, %c0_30] : memref<8x72xf32, #tpu.memory_space<vmem>>, vector<8x72xf32>
    %c17_i32_31 = arith.constant 17 : i32
    %93 = tpu.dynamic_rotate %91 by %c17_i32_31 dim 1 : vector<8x512xf32>, i32 -> vector<8x512xf32>
    %94 = arith.andi %13, %17 : vector<1x512xi1>
    %cst_32 = arith.constant 0.000000e+00 : f32
    %95 = vector.shape_cast %94 : vector<1x512xi1> to vector<1x512xi1>
    %96 = vector.broadcast %95 : vector<1x512xi1> to vector<8x512xi1>
    %97 = vector.broadcast %cst_32 : f32 to vector<8x512xf32>
    %98 = arith.select %96, %93, %97 : vector<8x512xi1>, vector<8x512xf32>
    %c16_i32_33 = arith.constant 16 : i32
    %99 = tpu.dynamic_rotate %91 by %c16_i32_33 dim 1 : vector<8x512xf32>, i32 -> vector<8x512xf32>
    %cst_34 = arith.constant 0.000000e+00 : f32
    %100 = vector.shape_cast %13 : vector<1x512xi1> to vector<1x512xi1>
    %101 = vector.broadcast %100 : vector<1x512xi1> to vector<8x512xi1>
    %102 = vector.broadcast %cst_34 : f32 to vector<8x512xf32>
    %103 = arith.select %101, %99, %102 : vector<8x512xi1>, vector<8x512xf32>
    %c15_i32_35 = arith.constant 15 : i32
    %104 = tpu.dynamic_rotate %91 by %c15_i32_35 dim 1 : vector<8x512xf32>, i32 -> vector<8x512xf32>
    %105 = arith.andi %13, %19 : vector<1x512xi1>
    %cst_36 = arith.constant 0.000000e+00 : f32
    %106 = vector.shape_cast %105 : vector<1x512xi1> to vector<1x512xi1>
    %107 = vector.broadcast %106 : vector<1x512xi1> to vector<8x512xi1>
    %108 = vector.broadcast %cst_36 : f32 to vector<8x512xf32>
    %109 = arith.select %107, %104, %108 : vector<8x512xi1>, vector<8x512xf32>
    %c1_i32_37 = arith.constant 1 : i32
    %110 = tpu.dynamic_rotate %91 by %c1_i32_37 dim 1 : vector<8x512xf32>, i32 -> vector<8x512xf32>
    %cst_38 = arith.constant 0.000000e+00 : f32
    %111 = vector.shape_cast %17 : vector<1x512xi1> to vector<1x512xi1>
    %112 = vector.broadcast %111 : vector<1x512xi1> to vector<8x512xi1>
    %113 = vector.broadcast %cst_38 : f32 to vector<8x512xf32>
    %114 = arith.select %112, %110, %113 : vector<8x512xi1>, vector<8x512xf32>
    %c511_i32_39 = arith.constant 511 : i32
    %115 = tpu.dynamic_rotate %91 by %c511_i32_39 dim 1 : vector<8x512xf32>, i32 -> vector<8x512xf32>
    %cst_40 = arith.constant 0.000000e+00 : f32
    %116 = vector.shape_cast %19 : vector<1x512xi1> to vector<1x512xi1>
    %117 = vector.broadcast %116 : vector<1x512xi1> to vector<8x512xi1>
    %118 = vector.broadcast %cst_40 : f32 to vector<8x512xf32>
    %119 = arith.select %117, %115, %118 : vector<8x512xi1>, vector<8x512xf32>
    %c497_i32_41 = arith.constant 497 : i32
    %120 = tpu.dynamic_rotate %91 by %c497_i32_41 dim 1 : vector<8x512xf32>, i32 -> vector<8x512xf32>
    %121 = arith.andi %15, %17 : vector<1x512xi1>
    %cst_42 = arith.constant 0.000000e+00 : f32
    %122 = vector.shape_cast %121 : vector<1x512xi1> to vector<1x512xi1>
    %123 = vector.broadcast %122 : vector<1x512xi1> to vector<8x512xi1>
    %124 = vector.broadcast %cst_42 : f32 to vector<8x512xf32>
    %125 = arith.select %123, %120, %124 : vector<8x512xi1>, vector<8x512xf32>
    %c496_i32_43 = arith.constant 496 : i32
    %126 = tpu.dynamic_rotate %91 by %c496_i32_43 dim 1 : vector<8x512xf32>, i32 -> vector<8x512xf32>
    %cst_44 = arith.constant 0.000000e+00 : f32
    %127 = vector.shape_cast %15 : vector<1x512xi1> to vector<1x512xi1>
    %128 = vector.broadcast %127 : vector<1x512xi1> to vector<8x512xi1>
    %129 = vector.broadcast %cst_44 : f32 to vector<8x512xf32>
    %130 = arith.select %128, %126, %129 : vector<8x512xi1>, vector<8x512xf32>
    %c495_i32_45 = arith.constant 495 : i32
    %131 = tpu.dynamic_rotate %91 by %c495_i32_45 dim 1 : vector<8x512xf32>, i32 -> vector<8x512xf32>
    %132 = arith.andi %15, %19 : vector<1x512xi1>
    %cst_46 = arith.constant 0.000000e+00 : f32
    %133 = vector.shape_cast %132 : vector<1x512xi1> to vector<1x512xi1>
    %134 = vector.broadcast %133 : vector<1x512xi1> to vector<8x512xi1>
    %135 = vector.broadcast %cst_46 : f32 to vector<8x512xf32>
    %136 = arith.select %134, %131, %135 : vector<8x512xi1>, vector<8x512xf32>
    %137 = tpu.concatenate %98, %103, %109, %114, %91, %119, %125, %130, %136 in 0 : vector<8x512xf32>, vector<8x512xf32>, vector<8x512xf32>, vector<8x512xf32>, vector<8x512xf32>, vector<8x512xf32>, vector<8x512xf32>, vector<8x512xf32>, vector<8x512xf32> -> vector<72x512xf32>
    %cst_47 = arith.constant dense<0.000000e+00> : vector<8x512xf32>
    %138 = tpu.matmul %92, %137, %cst_47 {dimension_numbers = #tpu.dot_dimension_numbers<[1], [0], [0], [1], [0, 0, 1, 1], [], []>} : vector<8x72xf32>, vector<72x512xf32>, vector<8x512xf32> -> vector<8x512xf32>
    %c0_48 = arith.constant 0 : index
    %c0_49 = arith.constant 0 : index
    %139 = vector.load %arg5[%c0_48, %c0_49] : memref<8x1xf32, #tpu.memory_space<vmem>>, vector<8x1xf32>
    %c0_50 = arith.constant 0 : index
    %c0_51 = arith.constant 0 : index
    %140 = vector.load %arg6[%c0_50, %c0_51] : memref<8x1xf32, #tpu.memory_space<vmem>>, vector<8x1xf32>
    %cst_52 = arith.constant dense<0.000000e+00> : vector<8xf32>
    %141 = vector.multi_reduction <add>, %138, %cst_52 [1] : vector<8x512xf32> to vector<8xf32>
    %142 = vector.shape_cast %141 : vector<8xf32> to vector<8x1xf32>
    %143 = arith.mulf %138, %138 : vector<8x512xf32>
    %cst_53 = arith.constant dense<0.000000e+00> : vector<8xf32>
    %144 = vector.multi_reduction <add>, %143, %cst_53 [1] : vector<8x512xf32> to vector<8xf32>
    %145 = vector.shape_cast %144 : vector<8xf32> to vector<8x1xf32>
    %cst_54 = arith.constant 0.001953125 : f32
    %146 = vector.broadcast %cst_54 : f32 to vector<8x1xf32>
    %147 = arith.mulf %142, %146 : vector<8x1xf32>
    %cst_55 = arith.constant 0.001953125 : f32
    %148 = vector.broadcast %cst_55 : f32 to vector<8x1xf32>
    %149 = arith.mulf %145, %148 : vector<8x1xf32>
    %150 = arith.mulf %147, %147 : vector<8x1xf32>
    %151 = arith.subf %149, %150 : vector<8x1xf32>
    %cst_56 = arith.constant 9.99999974E-6 : f32
    %152 = vector.broadcast %cst_56 : f32 to vector<8x1xf32>
    %153 = arith.addf %151, %152 : vector<8x1xf32>
    %154 = math.rsqrt %153 : vector<8x1xf32>
    %155 = arith.mulf %139, %154 : vector<8x1xf32>
    %156 = arith.mulf %147, %155 : vector<8x1xf32>
    %157 = arith.subf %140, %156 : vector<8x1xf32>
    %158 = vector.broadcast %155 : vector<8x1xf32> to vector<8x512xf32>
    %159 = arith.mulf %138, %158 : vector<8x512xf32>
    %160 = vector.broadcast %157 : vector<8x1xf32> to vector<8x512xf32>
    %161 = arith.addf %159, %160 : vector<8x512xf32>
    %cst_57 = arith.constant 0.000000e+00 : f32
    %162 = vector.broadcast %cst_57 : f32 to vector<8x512xf32>
    %163 = arith.maximumf %161, %162 : vector<8x512xf32>
    %164 = vector.extract_strided_slice %163 {offsets = [0, 0], sizes = [8, 256], strides = [1, 1]} : vector<8x512xf32> to vector<8x256xf32>
    %c0_58 = arith.constant 0 : index
    %c0_59 = arith.constant 0 : index
    %c0_60 = arith.constant 0 : index
    %165 = vector.load %arg8[%c0_58, %c0_59, %c0_60] : memref<2x8x256xf32, #tpu.memory_space<vmem>>, vector<1x8x256xf32>
    %166 = vector.shape_cast %165 : vector<1x8x256xf32> to vector<8x256xf32>
    %167 = vector.shape_cast %164 : vector<8x256xf32> to vector<1x8x256xf32>
    tpu.vector_store %arg8[%c0_58, %c0_59, %c0_60], %167 {strides = array<i32>} : memref<2x8x256xf32, #tpu.memory_space<vmem>>, vector<1x8x256xf32>,
    %168 = vector.extract_strided_slice %163 {offsets = [0, 256], sizes = [8, 256], strides = [1, 1]} : vector<8x512xf32> to vector<8x256xf32>
    %c1_61 = arith.constant 1 : index
    %c0_62 = arith.constant 0 : index
    %c0_63 = arith.constant 0 : index
    %169 = vector.load %arg8[%c1_61, %c0_62, %c0_63] : memref<2x8x256xf32, #tpu.memory_space<vmem>>, vector<1x8x256xf32>
    %170 = vector.shape_cast %169 : vector<1x8x256xf32> to vector<8x256xf32>
    %171 = vector.shape_cast %168 : vector<8x256xf32> to vector<1x8x256xf32>
    tpu.vector_store %arg8[%c1_61, %c0_62, %c0_63], %171 {strides = array<i32>} : memref<2x8x256xf32, #tpu.memory_space<vmem>>, vector<1x8x256xf32>,
    %172 = vector.extract_strided_slice %163 {offsets = [0, 0], sizes = [8, 256], strides = [1, 1]} : vector<8x512xf32> to vector<8x256xf32>
    %173 = tpu.transpose %172, [1, 0] : vector<8x256xf32> -> vector<256x8xf32>
    %174 = vector.shape_cast %173 : vector<256x8xf32> to vector<8x2x16x8xf32>
    %cst_64 = arith.constant dense<0xFF800000> : vector<8x16x8xf32>
    %175 = vector.multi_reduction <maximumf>, %174, %cst_64 [1] : vector<8x2x16x8xf32> to vector<8x16x8xf32>
    %176 = vector.shape_cast %175 : vector<8x16x8xf32> to vector<8x8x2x8xf32>
    %cst_65 = arith.constant dense<0xFF800000> : vector<8x8x8xf32>
    %177 = vector.multi_reduction <maximumf>, %176, %cst_65 [2] : vector<8x8x2x8xf32> to vector<8x8x8xf32>
    %178 = vector.shape_cast %177 : vector<8x8x8xf32> to vector<64x8xf32>
    %179 = tpu.transpose %178, [1, 0] : vector<64x8xf32> -> vector<8x64xf32>
    %c0_66 = arith.constant 0 : index
    %c0_67 = arith.constant 0 : index
    %c0_68 = arith.constant 0 : index
    %180 = vector.load %arg7[%c0_66, %c0_67, %c0_68] : memref<2x8x64xf32, #tpu.memory_space<vmem>>, vector<1x8x64xf32>
    %181 = vector.shape_cast %180 : vector<1x8x64xf32> to vector<8x64xf32>
    %182 = vector.shape_cast %179 : vector<8x64xf32> to vector<1x8x64xf32>
    tpu.vector_store %arg7[%c0_66, %c0_67, %c0_68], %182 {strides = array<i32>} : memref<2x8x64xf32, #tpu.memory_space<vmem>>, vector<1x8x64xf32>,
    %183 = vector.extract_strided_slice %163 {offsets = [0, 256], sizes = [8, 256], strides = [1, 1]} : vector<8x512xf32> to vector<8x256xf32>
    %184 = tpu.transpose %183, [1, 0] : vector<8x256xf32> -> vector<256x8xf32>
    %185 = vector.shape_cast %184 : vector<256x8xf32> to vector<8x2x16x8xf32>
    %cst_69 = arith.constant dense<0xFF800000> : vector<8x16x8xf32>
    %186 = vector.multi_reduction <maximumf>, %185, %cst_69 [1] : vector<8x2x16x8xf32> to vector<8x16x8xf32>
    %187 = vector.shape_cast %186 : vector<8x16x8xf32> to vector<8x8x2x8xf32>
    %cst_70 = arith.constant dense<0xFF800000> : vector<8x8x8xf32>
    %188 = vector.multi_reduction <maximumf>, %187, %cst_70 [2] : vector<8x8x2x8xf32> to vector<8x8x8xf32>
    %189 = vector.shape_cast %188 : vector<8x8x8xf32> to vector<64x8xf32>
    %190 = tpu.transpose %189, [1, 0] : vector<64x8xf32> -> vector<8x64xf32>
    %c1_71 = arith.constant 1 : index
    %c0_72 = arith.constant 0 : index
    %c0_73 = arith.constant 0 : index
    %191 = vector.load %arg7[%c1_71, %c0_72, %c0_73] : memref<2x8x64xf32, #tpu.memory_space<vmem>>, vector<1x8x64xf32>
    %192 = vector.shape_cast %191 : vector<1x8x64xf32> to vector<8x64xf32>
    %193 = vector.shape_cast %190 : vector<8x64xf32> to vector<1x8x64xf32>
    tpu.vector_store %arg7[%c1_71, %c0_72, %c0_73], %193 {strides = array<i32>} : memref<2x8x64xf32, #tpu.memory_space<vmem>>, vector<1x8x64xf32>,
    return
  }
}

</mosaic_0001>

<llo_original>
// kernel: downsample_block.1
$region0: #{downsample_block.1}
  #allocation0 [shape = 'u32[]', space=smem, size = 0x4, offset = 0x4, fixed_abs, tag = 'smem constant byte address 0x4 - core index']
  #allocation1 [shape = 'u32[72,128]{1,0:T(1,128)}', space=vmem, size = 0x9000, scoped, tag = 'internal scratch']
  %s0 = inlined_call_operand.vmem [shape: f32[2,4,256], index: 0, kind: input, shape index: {}]
  %s1 = inlined_call_operand.vmem [shape: f32[8,36], index: 1, kind: input, shape index: {}]
  %s2 = inlined_call_operand.vmem [shape: f32[8,1], index: 2, kind: input, shape index: {}]
  %s3 = inlined_call_operand.vmem [shape: f32[8,1], index: 3, kind: input, shape index: {}]
  %s4 = inlined_call_operand.vmem [shape: f32[8,72], index: 4, kind: input, shape index: {}]
  %s5 = inlined_call_operand.vmem [shape: f32[8,1], index: 5, kind: input, shape index: {}]
  %s6 = inlined_call_operand.vmem [shape: f32[8,1], index: 6, kind: input, shape index: {}]
  %s7 = inlined_call_operand.vmem [shape: f32[2,8,64], index: 7, kind: output, shape index: {0}]
  %s8 = inlined_call_operand.vmem [shape: f32[2,8,256], index: 8, kind: output, shape index: {1}]
  %9 = xla_tuple %s7, %s8
  %s10 = sld [smem:[#allocation0]]
  $region46: #{downsample_block.1} parent=0
    _
  %s12 = ssub.s32 1, %s10
  %s13 = scalar_select 0, %s12, %s10
  // Predicated region
  $region2: #{downsample_block.1} parent=0 // pred_check
    _
  $region3: #{downsample_block.1} parent=0 // pred_check_branch
    %15 = sbr.rel (0) target = $region5
  $region4: #{downsample_block.1} parent=0 // pred_region
    _
  $region5: #{downsample_block.1} parent=0 // pred_fallthru
    _
  // Predicated region
  $region6: #{downsample_block.1} parent=0 // pred_check
    _
  $region7: #{downsample_block.1} parent=0 // pred_check_branch
    %17 = sbr.rel (0) target = $region9
  $region8: #{downsample_block.1} parent=0 // pred_region
    _
  $region9: #{downsample_block.1} parent=0 // pred_fallthru
    _
  // Predicated region
  $region10: #{downsample_block.1} parent=0 // pred_check
    _
  $region11: #{downsample_block.1} parent=0 // pred_check_branch
    %19 = sbr.rel (0) target = $region13
  $region12: #{downsample_block.1} parent=0 // pred_region
    _
  $region13: #{downsample_block.1} parent=0 // pred_fallthru
    _
  // Predicated region
  $region14: #{downsample_block.1} parent=0 // pred_check
    _
  $region15: #{downsample_block.1} parent=0 // pred_check_branch
    %21 = sbr.rel (0) target = $region17
  $region16: #{downsample_block.1} parent=0 // pred_region
    _
  $region17: #{downsample_block.1} parent=0 // pred_fallthru
    _
  // Predicated region
  $region18: #{downsample_block.1} parent=0 // pred_check
    _
  $region19: #{downsample_block.1} parent=0 // pred_check_branch
    %23 = sbr.rel (0) target = $region21
  $region20: #{downsample_block.1} parent=0 // pred_region
    _
  $region21: #{downsample_block.1} parent=0 // pred_fallthru
    _
  // Predicated region
  $region22: #{downsample_block.1} parent=0 // pred_check
    _
  $region23: #{downsample_block.1} parent=0 // pred_check_branch
    %25 = sbr.rel (0) target = $region25
  $region24: #{downsample_block.1} parent=0 // pred_region
    _
  $region25: #{downsample_block.1} parent=0 // pred_fallthru
    _
  // Predicated region
  $region26: #{downsample_block.1} parent=0 // pred_check
    _
  $region27: #{downsample_block.1} parent=0 // pred_check_branch
    %27 = sbr.rel (0) target = $region29
  $region28: #{downsample_block.1} parent=0 // pred_region
    _
  $region29: #{downsample_block.1} parent=0 // pred_fallthru
    _
  %v28 = vld [vmem:[%s0] sm:$0xff]
  %s29 = scalar_lea.vmem %s0, 8
  %v30 = vld [vmem:[%s29] sm:$0xff]
  %32 = vst [vmem:[#allocation1] ss:$2 sm:$0xff] %v28
  %v33 = vld.sshfl [vmem:[#allocation1] sm:$0xff pattern:$0x75316420]
  %v34 = vld.sshfl [vmem:[#allocation1 + $0x8] sm:$0xff pattern:$0x75316420]
  %38 = vst [vmem:[#allocation1] ss:$2 sm:$0xff] %v30
  %v39 = vld.sshfl [vmem:[#allocation1] sm:$0xff pattern:$0x75316420]
  %v40 = vld.sshfl [vmem:[#allocation1 + $0x8] sm:$0xff pattern:$0x75316420]
  %v43 = vlaneseq
  %v44 = vand.u32 %v43, 127
  %v45 = vadd.s32 %v44, 128
  %v46 = vadd.s32 %v44, 256
  %v47 = vadd.s32 %v44, 384
  %v48 = vand.u32 %v44, 15
  %v49 = vand.u32 %v45, 15
  %v50 = vand.u32 %v46, 15
  %v51 = vand.u32 %v47, 15
  %v52 = vshra.s32 %v44, 4
  %v53 = vshra.s32 %v45, 4
  %v54 = vshra.s32 %v46, 4
  %v55 = vshra.s32 %v47, 4
  %v56 = vand.u32 %v52, 15
  %v57 = vand.u32 %v53, 15
  %v58 = vand.u32 %v54, 15
  %v59 = vand.u32 %v55, 15
  %vm60 = vcmp.ge.s32.totalorder %v56, 1
  %vm61 = vcmp.ge.s32.totalorder %v57, 1
  %vm62 = vcmp.ge.s32.totalorder %v58, 1
  %vm63 = vcmp.ge.s32.totalorder %v59, 1
  %vm64 = vcmp.le.s32.totalorder %v56, 14
  %vm65 = vcmp.le.s32.totalorder %v57, 14
  %vm66 = vcmp.le.s32.totalorder %v58, 14
  %vm67 = vcmp.le.s32.totalorder %v59, 14
  %vm68 = vcmp.ge.s32.totalorder %v48, 1
  %vm69 = vcmp.ge.s32.totalorder %v49, 1
  %vm70 = vcmp.ge.s32.totalorder %v50, 1
  %vm71 = vcmp.ge.s32.totalorder %v51, 1
  %vm72 = vcmp.le.s32.totalorder %v48, 14
  %vm73 = vcmp.le.s32.totalorder %v49, 14
  %vm74 = vcmp.le.s32.totalorder %v50, 14
  %vm75 = vcmp.le.s32.totalorder %v51, 14
  %v76 = vld [vmem:[%s1] sm:$0xff]
  %77 = vrot.lane.b32.xlu0 %v33, 17
  %v78 = vpop.permute.xlu0 %77
  %79 = vrot.lane.b32.xlu0 %v34, 17
  %v80 = vpop.permute.xlu0 %79
  %81 = vrot.lane.b32.xlu0 %v39, 17
  %v82 = vpop.permute.xlu0 %81
  %83 = vrot.lane.b32.xlu0 %v40, 17
  %v84 = vpop.permute.xlu0 %83
  %vm85 = vcmp.lt.s32.totalorder %v44, 17
  %v86 = vsel %vm85, %v82, %v84
  %v87 = vsel %vm85, %v80, %v82
  %v88 = vsel %vm85, %v78, %v80
  %v89 = vsel %vm85, %v84, %v78
  %vm90 = vmand %vm60, %vm68
  %vm91 = vmand %vm61, %vm69
  %vm92 = vmand %vm62, %vm70
  %vm93 = vmand %vm63, %vm71
  %v94 = vsel %vm90, 1, 0
  %v95 = vsel %vm91, 1, 0
  %v96 = vsel %vm92, 1, 0
  %v97 = vsel %vm93, 1, 0
  %vm98 = vcmp.eq.s32.totalorder %v94, 1
  %vm99 = vcmp.eq.s32.totalorder %v95, 1
  %vm100 = vcmp.eq.s32.totalorder %v96, 1
  %vm101 = vcmp.eq.s32.totalorder %v97, 1
  %v102 = vsel %vm98, %v89, 0.0
  %v103 = vsel %vm99, %v88, 0.0
  %v104 = vsel %vm100, %v87, 0.0
  %v105 = vsel %vm101, %v86, 0.0
  %106 = vrot.lane.b32.xlu0 %v33, 16
  %v107 = vpop.permute.xlu0 %106
  %108 = vrot.lane.b32.xlu0 %v34, 16
  %v109 = vpop.permute.xlu0 %108
  %110 = vrot.lane.b32.xlu0 %v39, 16
  %v111 = vpop.permute.xlu0 %110
  %112 = vrot.lane.b32.xlu0 %v40, 16
  %v113 = vpop.permute.xlu0 %112
  %vm114 = vcmp.lt.s32.totalorder %v44, 16
  %v115 = vsel %vm114, %v111, %v113
  %v116 = vsel %vm114, %v109, %v111
  %v117 = vsel %vm114, %v107, %v109
  %v118 = vsel %vm114, %v113, %v107
  %v119 = vsel %vm60, 1, 0
  %v120 = vsel %vm61, 1, 0
  %v121 = vsel %vm62, 1, 0
  %v122 = vsel %vm63, 1, 0
  %vm123 = vcmp.eq.s32.totalorder %v119, 1
  %vm124 = vcmp.eq.s32.totalorder %v120, 1
  %vm125 = vcmp.eq.s32.totalorder %v121, 1
  %vm126 = vcmp.eq.s32.totalorder %v122, 1
  %v127 = vsel %vm123, %v118, 0.0
  %v128 = vsel %vm124, %v117, 0.0
  %v129 = vsel %vm125, %v116, 0.0
  %v130 = vsel %vm126, %v115, 0.0
  %131 = vrot.lane.b32.xlu0 %v33, 15
  %v132 = vpop.permute.xlu0 %131
  %133 = vrot.lane.b32.xlu0 %v34, 15
  %v134 = vpop.permute.xlu0 %133
  %135 = vrot.lane.b32.xlu0 %v39, 15
  %v136 = vpop.permute.xlu0 %135
  %137 = vrot.lane.b32.xlu0 %v40, 15
  %v138 = vpop.permute.xlu0 %137
  %vm139 = vcmp.lt.s32.totalorder %v44, 15
  %v140 = vsel %vm139, %v136, %v138
  %v141 = vsel %vm139, %v134, %v136
  %v142 = vsel %vm139, %v132, %v134
  %v143 = vsel %vm139, %v138, %v132
  %vm144 = vmand %vm60, %vm72
  %vm145 = vmand %vm61, %vm73
  %vm146 = vmand %vm62, %vm74
  %vm147 = vmand %vm63, %vm75
  %v148 = vsel %vm144, 1, 0
  %v149 = vsel %vm145, 1, 0
  %v150 = vsel %vm146, 1, 0
  %v151 = vsel %vm147, 1, 0
  %vm152 = vcmp.eq.s32.totalorder %v148, 1
  %vm153 = vcmp.eq.s32.totalorder %v149, 1
  %vm154 = vcmp.eq.s32.totalorder %v150, 1
  %vm155 = vcmp.eq.s32.totalorder %v151, 1
  %v156 = vsel %vm152, %v143, 0.0
  %v157 = vsel %vm153, %v142, 0.0
  %v158 = vsel %vm154, %v141, 0.0
  %v159 = vsel %vm155, %v140, 0.0
  %160 = vrot.lane.b32.xlu0 %v33, 1
  %v161 = vpop.permute.xlu0 %160
  %162 = vrot.lane.b32.xlu0 %v34, 1
  %v163 = vpop.permute.xlu0 %162
  %164 = vrot.lane.b32.xlu0 %v39, 1
  %v165 = vpop.permute.xlu0 %164
  %166 = vrot.lane.b32.xlu0 %v40, 1
  %v167 = vpop.permute.xlu0 %166
  %vm168 = vcmp.lt.s32.totalorder %v44, 1
  %v169 = vsel %vm168, %v165, %v167
  %v170 = vsel %vm168, %v163, %v165
  %v171 = vsel %vm168, %v161, %v163
  %v172 = vsel %vm168, %v167, %v161
  %v173 = vsel %vm68, 1, 0
  %v174 = vsel %vm69, 1, 0
  %v175 = vsel %vm70, 1, 0
  %v176 = vsel %vm71, 1, 0
  %vm177 = vcmp.eq.s32.totalorder %v173, 1
  %vm178 = vcmp.eq.s32.totalorder %v174, 1
  %vm179 = vcmp.eq.s32.totalorder %v175, 1
  %vm180 = vcmp.eq.s32.totalorder %v176, 1
  %v181 = vsel %vm177, %v172, 0.0
  %v182 = vsel %vm178, %v171, 0.0
  %v183 = vsel %vm179, %v170, 0.0
  %v184 = vsel %vm180, %v169, 0.0
  %185 = vrot.lane.b32.xlu0 %v33, 127
  %v186 = vpop.permute.xlu0 %185
  %187 = vrot.lane.b32.xlu0 %v34, 127
  %v188 = vpop.permute.xlu0 %187
  %189 = vrot.lane.b32.xlu0 %v39, 127
  %v190 = vpop.permute.xlu0 %189
  %191 = vrot.lane.b32.xlu0 %v40, 127
  %v192 = vpop.permute.xlu0 %191
  %vm193 = vcmp.lt.s32.totalorder %v44, 127
  %v194 = vsel %vm193, %v190, %v192
  %v195 = vsel %vm193, %v188, %v190
  %v196 = vsel %vm193, %v186, %v188
  %v197 = vsel %vm193, %v192, %v186
  %v198 = vsel %vm72, 1, 0
  %v199 = vsel %vm73, 1, 0
  %v200 = vsel %vm74, 1, 0
  %v201 = vsel %vm75, 1, 0
  %vm202 = vcmp.eq.s32.totalorder %v198, 1
  %vm203 = vcmp.eq.s32.totalorder %v199, 1
  %vm204 = vcmp.eq.s32.totalorder %v200, 1
  %vm205 = vcmp.eq.s32.totalorder %v201, 1
  %v206 = vsel %vm202, %v196, 0.0
  %v207 = vsel %vm203, %v195, 0.0
  %v208 = vsel %vm204, %v194, 0.0
  %v209 = vsel %vm205, %v197, 0.0
  %210 = vrot.lane.b32.xlu0 %v33, 113
  %v211 = vpop.permute.xlu0 %210
  %212 = vrot.lane.b32.xlu0 %v34, 113
  %v213 = vpop.permute.xlu0 %212
  %214 = vrot.lane.b32.xlu0 %v39, 113
  %v215 = vpop.permute.xlu0 %214
  %216 = vrot.lane.b32.xlu0 %v40, 113
  %v217 = vpop.permute.xlu0 %216
  %vm218 = vcmp.lt.s32.totalorder %v44, 113
  %v219 = vsel %vm218, %v215, %v217
  %v220 = vsel %vm218, %v213, %v215
  %v221 = vsel %vm218, %v211, %v213
  %v222 = vsel %vm218, %v217, %v211
  %vm223 = vmand %vm64, %vm68
  %vm224 = vmand %vm65, %vm69
  %vm225 = vmand %vm66, %vm70
  %vm226 = vmand %vm67, %vm71
  %v227 = vsel %vm223, 1, 0
  %v228 = vsel %vm224, 1, 0
  %v229 = vsel %vm225, 1, 0
  %v230 = vsel %vm226, 1, 0
  %vm231 = vcmp.eq.s32.totalorder %v227, 1
  %vm232 = vcmp.eq.s32.totalorder %v228, 1
  %vm233 = vcmp.eq.s32.totalorder %v229, 1
  %vm234 = vcmp.eq.s32.totalorder %v230, 1
  %v235 = vsel %vm231, %v221, 0.0
  %v236 = vsel %vm232, %v220, 0.0
  %v237 = vsel %vm233, %v219, 0.0
  %v238 = vsel %vm234, %v222, 0.0
  %239 = vrot.lane.b32.xlu0 %v33, 112
  %v240 = vpop.permute.xlu0 %239
  %241 = vrot.lane.b32.xlu0 %v34, 112
  %v242 = vpop.permute.xlu0 %241
  %243 = vrot.lane.b32.xlu0 %v39, 112
  %v244 = vpop.permute.xlu0 %243
  %245 = vrot.lane.b32.xlu0 %v40, 112
  %v246 = vpop.permute.xlu0 %245
  %vm247 = vcmp.lt.s32.totalorder %v44, 112
  %v248 = vsel %vm247, %v244, %v246
  %v249 = vsel %vm247, %v242, %v244
  %v250 = vsel %vm247, %v240, %v242
  %v251 = vsel %vm247, %v246, %v240
  %v252 = vsel %vm64, 1, 0
  %v253 = vsel %vm65, 1, 0
  %v254 = vsel %vm66, 1, 0
  %v255 = vsel %vm67, 1, 0
  %vm256 = vcmp.eq.s32.totalorder %v252, 1
  %vm257 = vcmp.eq.s32.totalorder %v253, 1
  %vm258 = vcmp.eq.s32.totalorder %v254, 1
  %vm259 = vcmp.eq.s32.totalorder %v255, 1
  %v260 = vsel %vm256, %v250, 0.0
  %v261 = vsel %vm257, %v249, 0.0
  %v262 = vsel %vm258, %v248, 0.0
  %v263 = vsel %vm259, %v251, 0.0
  %264 = vrot.lane.b32.xlu0 %v33, 111
  %v265 = vpop.permute.xlu0 %264
  %266 = vrot.lane.b32.xlu0 %v34, 111
  %v267 = vpop.permute.xlu0 %266
  %268 = vrot.lane.b32.xlu0 %v39, 111
  %v269 = vpop.permute.xlu0 %268
  %270 = vrot.lane.b32.xlu0 %v40, 111
  %v271 = vpop.permute.xlu0 %270
  %vm272 = vcmp.lt.s32.totalorder %v44, 111
  %v273 = vsel %vm272, %v269, %v271
  %v274 = vsel %vm272, %v267, %v269
  %v275 = vsel %vm272, %v265, %v267
  %v276 = vsel %vm272, %v271, %v265
  %vm277 = vmand %vm64, %vm72
  %vm278 = vmand %vm65, %vm73
  %vm279 = vmand %vm66, %vm74
  %vm280 = vmand %vm67, %vm75
  %v281 = vsel %vm277, 1, 0
  %v282 = vsel %vm278, 1, 0
  %v283 = vsel %vm279, 1, 0
  %v284 = vsel %vm280, 1, 0
  %vm285 = vcmp.eq.s32.totalorder %v281, 1
  %vm286 = vcmp.eq.s32.totalorder %v282, 1
  %vm287 = vcmp.eq.s32.totalorder %v283, 1
  %vm288 = vcmp.eq.s32.totalorder %v284, 1
  %v289 = vsel %vm285, %v275, 0.0
  %v290 = vsel %vm286, %v274, 0.0
  %v291 = vsel %vm287, %v273, 0.0
  %v292 = vsel %vm288, %v276, 0.0
  %v297 = vrot.slane %v127, 4
  %v298 = vrot.slane %v128, 4
  %v299 = vrot.slane %v129, 4
  %v300 = vrot.slane %v130, 4
  %v309 = vrot.slane %v181, 4
  %v310 = vrot.slane %v182, 4
  %v311 = vrot.slane %v183, 4
  %v312 = vrot.slane %v184, 4
  %v321 = vrot.slane %v206, 4
  %v322 = vrot.slane %v207, 4
  %v323 = vrot.slane %v208, 4
  %v324 = vrot.slane %v209, 4
  %v333 = vrot.slane %v260, 4
  %v334 = vrot.slane %v261, 4
  %v335 = vrot.slane %v262, 4
  %v336 = vrot.slane %v263, 4
  %vm341 = vcmask 1043456
  %v342 = vsel %vm341, %v102, %v297
  %v343 = vsel %vm341, %v103, %v298
  %v344 = vsel %vm341, %v104, %v299
  %v345 = vsel %vm341, %v105, %v300
  %v346 = vsel %vm341, %v156, %v309
  %v347 = vsel %vm341, %v157, %v310
  %v348 = vsel %vm341, %v158, %v311
  %v349 = vsel %vm341, %v159, %v312
  %v350 = vsel %vm341, %v33, %v321
  %v351 = vsel %vm341, %v34, %v322
  %v352 = vsel %vm341, %v39, %v323
  %v353 = vsel %vm341, %v40, %v324
  %v354 = vsel %vm341, %v235, %v333
  %v355 = vsel %vm341, %v236, %v334
  %v356 = vsel %vm341, %v237, %v335
  %v357 = vsel %vm341, %v238, %v336
  %vm358 = vcmask 293888
  %v360 = vsel %vm358, %v76, 0
  %v363 = vsel %vm341, %v289, 0
  %v366 = vsel %vm341, %v290, 0
  %v369 = vsel %vm341, %v291, 0
  %v372 = vsel %vm341, %v292, 0
  %374 = vmatpush.msra.mxu0 0.0
  %375 = vmatpush.msra.mxu0 0.0
  %376 = vmatpush.msra.mxu0 0.0
  %377 = vmatpush.msra.mxu0 0.0
  %378 = vmatpush.msra.mxu0 0.0
  %379 = vmatpush.msra.mxu0 0.0
  %380 = vmatpush.msra.mxu0 0.0
  %381 = vmatpush.msra.mxu0 0.0
  %382 = vmatpush.msra.mxu0 0.0
  %383 = vmatpush.msra.mxu0 0.0
  %384 = vmatpush.msra.mxu0 0.0
  %385 = vmatpush.msra.mxu0 %v363
  %386 = vmatpush.msra.mxu0 %v354
  %387 = vmatpush.msra.mxu0 %v350
  %388 = vmatpush.msra.mxu0 %v346
  %389 = vmatpush.msra.mxu0 %v342
  %390 = vmatmul.f32.gmra.mxu0 %v360
  %v391 = vpop.f32.mrf.mxu0
  %v392 = vadd.f32 0.0, %v391
  %393 = vdwg.mxu0
  %394 = vmatpush.msra.mxu0 0.0
  %395 = vmatpush.msra.mxu0 0.0
  %396 = vmatpush.msra.mxu0 0.0
  %397 = vmatpush.msra.mxu0 0.0
  %398 = vmatpush.msra.mxu0 0.0
  %399 = vmatpush.msra.mxu0 0.0
  %400 = vmatpush.msra.mxu0 0.0
  %401 = vmatpush.msra.mxu0 0.0
  %402 = vmatpush.msra.mxu0 0.0
  %403 = vmatpush.msra.mxu0 0.0
  %404 = vmatpush.msra.mxu0 0.0
  %405 = vmatpush.msra.mxu0 %v366
  %406 = vmatpush.msra.mxu0 %v355
  %407 = vmatpush.msra.mxu0 %v351
  %408 = vmatpush.msra.mxu0 %v347
  %409 = vmatpush.msra.mxu0 %v343
  %410 = vmatmul.f32.gmra.mxu0 %v360
  %v411 = vpop.f32.mrf.mxu0
  %v412 = vadd.f32 0.0, %v411
  %413 = vdwg.mxu0
  %414 = vmatpush.msra.mxu0 0.0
  %415 = vmatpush.msra.mxu0 0.0
  %416 = vmatpush.msra.mxu0 0.0
  %417 = vmatpush.msra.mxu0 0.0
  %418 = vmatpush.msra.mxu0 0.0
  %419 = vmatpush.msra.mxu0 0.0
  %420 = vmatpush.msra.mxu0 0.0
  %421 = vmatpush.msra.mxu0 0.0
  %422 = vmatpush.msra.mxu0 0.0
  %423 = vmatpush.msra.mxu0 0.0
  %424 = vmatpush.msra.mxu0 0.0
  %425 = vmatpush.msra.mxu0 %v369
  %426 = vmatpush.msra.mxu0 %v356
  %427 = vmatpush.msra.mxu0 %v352
  %428 = vmatpush.msra.mxu0 %v348
  %429 = vmatpush.msra.mxu0 %v344
  %430 = vmatmul.f32.gmra.mxu0 %v360
  %v431 = vpop.f32.mrf.mxu0
  %v432 = vadd.f32 0.0, %v431
  %433 = vdwg.mxu0
  %434 = vmatpush.msra.mxu0 0.0
  %435 = vmatpush.msra.mxu0 0.0
  %436 = vmatpush.msra.mxu0 0.0
  %437 = vmatpush.msra.mxu0 0.0
  %438 = vmatpush.msra.mxu0 0.0
  %439 = vmatpush.msra.mxu0 0.0
  %440 = vmatpush.msra.mxu0 0.0
  %441 = vmatpush.msra.mxu0 0.0
  %442 = vmatpush.msra.mxu0 0.0
  %443 = vmatpush.msra.mxu0 0.0
  %444 = vmatpush.msra.mxu0 0.0
  %445 = vmatpush.msra.mxu0 %v372
  %446 = vmatpush.msra.mxu0 %v357
  %447 = vmatpush.msra.mxu0 %v353
  %448 = vmatpush.msra.mxu0 %v349
  %449 = vmatpush.msra.mxu0 %v345
  %450 = vmatmul.f32.gmra.mxu0 %v360
  %v451 = vpop.f32.mrf.mxu0
  %v452 = vadd.f32 0.0, %v451
  %453 = vdwg.mxu0
  %v454 = vld [vmem:[%s2] sm:$0xff]
  %v455 = vld [vmem:[%s3] sm:$0xff]
  %v456 = vadd.f32 %v392, %v412
  %v457 = vadd.f32 %v456, %v432
  %v458 = vadd.f32 %v457, %v452
  %459 = vadd.xlane.f32.xlu0 %v458
  %v460 = vpop.xlane.xlu0 %459
  %v461 = vmul.f32 %v392, %v392
  %v462 = vmul.f32 %v412, %v412
  %v463 = vmul.f32 %v432, %v432
  %v464 = vmul.f32 %v452, %v452
  %v465 = vadd.f32 %v461, %v462
  %v466 = vadd.f32 %v465, %v463
  %v467 = vadd.f32 %v466, %v464
  %468 = vadd.xlane.f32.xlu0 %v467
  %v469 = vpop.xlane.xlu0 %468
  %v470 = vmul.f32 %v460, 0.001953125
  %v471 = vmul.f32 %v469, 0.001953125
  %v472 = vmul.f32 %v470, %v470
  %v473 = vsub.f32 %v471, %v472
  %v474 = vadd.f32 %v473, 1e-05
  %v475 = vrsqrt.pop %v474
  %v476 = vmul.f32 %v475, %v474
  %v477 = vmul.f32 %v476, %v475
  %v478 = vmul.f32 0.5, %v477
  %v479 = vsub.f32 1.5, %v478
  %v480 = vmul.f32 %v475, %v479
  %vm481 = vweird.f32 %v474
  %vm482 = vweird.f32 %v475
  %vm483 = vmor %vm481, %vm482
  %v484 = vsel %vm483, %v475, %v480
  %v485 = vmul.f32 %v454, %v484
  %v486 = vmul.f32 %v470, %v485
  %v487 = vsub.f32 %v455, %v486
  %489 = vset.pattern.permute.xlu0 0
  %490 = vperm.xlu0 %489, %v485
  %v491 = vpop.permute.xlu0 %490
  %v493 = vmul.f32 %v392, %v491
  %v494 = vmul.f32 %v412, %v491
  %v495 = vmul.f32 %v432, %v491
  %v496 = vmul.f32 %v452, %v491
  %498 = vset.pattern.permute.xlu0 0
  %499 = vperm.xlu0 %498, %v487
  %v500 = vpop.permute.xlu0 %499
  %v502 = vadd.f32 %v493, %v500
  %v503 = vadd.f32 %v494, %v500
  %v504 = vadd.f32 %v495, %v500
  %v505 = vadd.f32 %v496, %v500
  %v506 = vmax.f32 %v502, 0.0
  %v507 = vmax.f32 %v503, 0.0
  %v508 = vmax.f32 %v504, 0.0
  %v509 = vmax.f32 %v505, 0.0
  %v510 = vld [vmem:[%s4] sm:$0xff]
  %511 = vrot.lane.b32.xlu0 %v506, 17
  %v512 = vpop.permute.xlu0 %511
  %513 = vrot.lane.b32.xlu0 %v507, 17
  %v514 = vpop.permute.xlu0 %513
  %515 = vrot.lane.b32.xlu0 %v508, 17
  %v516 = vpop.permute.xlu0 %515
  %517 = vrot.lane.b32.xlu0 %v509, 17
  %v518 = vpop.permute.xlu0 %517
  %v519 = vsel %vm85, %v516, %v518
  %v520 = vsel %vm85, %v514, %v516
  %v521 = vsel %vm85, %v512, %v514
  %v522 = vsel %vm85, %v518, %v512
  %v523 = vsel %vm98, %v522, 0.0
  %v524 = vsel %vm99, %v521, 0.0
  %v525 = vsel %vm100, %v520, 0.0
  %v526 = vsel %vm101, %v519, 0.0
  %527 = vrot.lane.b32.xlu0 %v506, 16
  %v528 = vpop.permute.xlu0 %527
  %529 = vrot.lane.b32.xlu0 %v507, 16
  %v530 = vpop.permute.xlu0 %529
  %531 = vrot.lane.b32.xlu0 %v508, 16
  %v532 = vpop.permute.xlu0 %531
  %533 = vrot.lane.b32.xlu0 %v509, 16
  %v534 = vpop.permute.xlu0 %533
  %v535 = vsel %vm114, %v532, %v534
  %v536 = vsel %vm114, %v530, %v532
  %v537 = vsel %vm114, %v528, %v530
  %v538 = vsel %vm114, %v534, %v528
  %v539 = vsel %vm123, %v538, 0.0
  %v540 = vsel %vm124, %v537, 0.0
  %v541 = vsel %vm125, %v536, 0.0
  %v542 = vsel %vm126, %v535, 0.0
  %543 = vrot.lane.b32.xlu0 %v506, 15
  %v544 = vpop.permute.xlu0 %543
  %545 = vrot.lane.b32.xlu0 %v507, 15
  %v546 = vpop.permute.xlu0 %545
  %547 = vrot.lane.b32.xlu0 %v508, 15
  %v548 = vpop.permute.xlu0 %547
  %549 = vrot.lane.b32.xlu0 %v509, 15
  %v550 = vpop.permute.xlu0 %549
  %v551 = vsel %vm139, %v548, %v550
  %v552 = vsel %vm139, %v546, %v548
  %v553 = vsel %vm139, %v544, %v546
  %v554 = vsel %vm139, %v550, %v544
  %v555 = vsel %vm152, %v554, 0.0
  %v556 = vsel %vm153, %v553, 0.0
  %v557 = vsel %vm154, %v552, 0.0
  %v558 = vsel %vm155, %v551, 0.0
  %559 = vrot.lane.b32.xlu0 %v506, 1
  %v560 = vpop.permute.xlu0 %559
  %561 = vrot.lane.b32.xlu0 %v507, 1
  %v562 = vpop.permute.xlu0 %561
  %563 = vrot.lane.b32.xlu0 %v508, 1
  %v564 = vpop.permute.xlu0 %563
  %565 = vrot.lane.b32.xlu0 %v509, 1
  %v566 = vpop.permute.xlu0 %565
  %v567 = vsel %vm168, %v564, %v566
  %v568 = vsel %vm168, %v562, %v564
  %v569 = vsel %vm168, %v560, %v562
  %v570 = vsel %vm168, %v566, %v560
  %v571 = vsel %vm177, %v570, 0.0
  %v572 = vsel %vm178, %v569, 0.0
  %v573 = vsel %vm179, %v568, 0.0
  %v574 = vsel %vm180, %v567, 0.0
  %575 = vrot.lane.b32.xlu0 %v506, 127
  %v576 = vpop.permute.xlu0 %575
  %577 = vrot.lane.b32.xlu0 %v507, 127
  %v578 = vpop.permute.xlu0 %577
  %579 = vrot.lane.b32.xlu0 %v508, 127
  %v580 = vpop.permute.xlu0 %579
  %581 = vrot.lane.b32.xlu0 %v509, 127
  %v582 = vpop.permute.xlu0 %581
  %v583 = vsel %vm193, %v580, %v582
  %v584 = vsel %vm193, %v578, %v580
  %v585 = vsel %vm193, %v576, %v578
  %v586 = vsel %vm193, %v582, %v576
  %v587 = vsel %vm202, %v585, 0.0
  %v588 = vsel %vm203, %v584, 0.0
  %v589 = vsel %vm204, %v583, 0.0
  %v590 = vsel %vm205, %v586, 0.0
  %591 = vrot.lane.b32.xlu0 %v506, 113
  %v592 = vpop.permute.xlu0 %591
  %593 = vrot.lane.b32.xlu0 %v507, 113
  %v594 = vpop.permute.xlu0 %593
  %595 = vrot.lane.b32.xlu0 %v508, 113
  %v596 = vpop.permute.xlu0 %595
  %597 = vrot.lane.b32.xlu0 %v509, 113
  %v598 = vpop.permute.xlu0 %597
  %v599 = vsel %vm218, %v596, %v598
  %v600 = vsel %vm218, %v594, %v596
  %v601 = vsel %vm218, %v592, %v594
  %v602 = vsel %vm218, %v598, %v592
  %v603 = vsel %vm231, %v601, 0.0
  %v604 = vsel %vm232, %v600, 0.0
  %v605 = vsel %vm233, %v599, 0.0
  %v606 = vsel %vm234, %v602, 0.0
  %607 = vrot.lane.b32.xlu0 %v506, 112
  %v608 = vpop.permute.xlu0 %607
  %609 = vrot.lane.b32.xlu0 %v507, 112
  %v610 = vpop.permute.xlu0 %609
  %611 = vrot.lane.b32.xlu0 %v508, 112
  %v612 = vpop.permute.xlu0 %611
  %613 = vrot.lane.b32.xlu0 %v509, 112
  %v614 = vpop.permute.xlu0 %613
  %v615 = vsel %vm247, %v612, %v614
  %v616 = vsel %vm247, %v610, %v612
  %v617 = vsel %vm247, %v608, %v610
  %v618 = vsel %vm247, %v614, %v608
  %v619 = vsel %vm256, %v617, 0.0
  %v620 = vsel %vm257, %v616, 0.0
  %v621 = vsel %vm258, %v615, 0.0
  %v622 = vsel %vm259, %v618, 0.0
  %623 = vrot.lane.b32.xlu0 %v506, 111
  %v624 = vpop.permute.xlu0 %623
  %625 = vrot.lane.b32.xlu0 %v507, 111
  %v626 = vpop.permute.xlu0 %625
  %627 = vrot.lane.b32.xlu0 %v508, 111
  %v628 = vpop.permute.xlu0 %627
  %629 = vrot.lane.b32.xlu0 %v509, 111
  %v630 = vpop.permute.xlu0 %629
  %v631 = vsel %vm272, %v628, %v630
  %v632 = vsel %vm272, %v626, %v628
  %v633 = vsel %vm272, %v624, %v626
  %v634 = vsel %vm272, %v630, %v624
  %v635 = vsel %vm285, %v633, 0.0
  %v636 = vsel %vm286, %v632, 0.0
  %v637 = vsel %vm287, %v631, 0.0
  %v638 = vsel %vm288, %v634, 0.0
  %vm639 = vcmask 588800
  %v641 = vsel %vm639, %v510, 0
  %643 = vmatpush.msra.mxu0 0.0
  %644 = vmatpush.msra.mxu0 0.0
  %645 = vmatpush.msra.mxu0 0.0
  %646 = vmatpush.msra.mxu0 0.0
  %647 = vmatpush.msra.mxu0 0.0
  %648 = vmatpush.msra.mxu0 0.0
  %649 = vmatpush.msra.mxu0 0.0
  %650 = vmatpush.msra.mxu0 %v635
  %651 = vmatpush.msra.mxu0 %v619
  %652 = vmatpush.msra.mxu0 %v603
  %653 = vmatpush.msra.mxu0 %v587
  %654 = vmatpush.msra.mxu0 %v506
  %655 = vmatpush.msra.mxu0 %v571
  %656 = vmatpush.msra.mxu0 %v555
  %657 = vmatpush.msra.mxu0 %v539
  %658 = vmatpush.msra.mxu0 %v523
  %659 = vmatmul.f32.gmra.mxu0 %v641
  %v660 = vpop.f32.mrf.mxu0
  %v661 = vadd.f32 0.0, %v660
  %662 = vdwg.mxu0
  %663 = vmatpush.msra.mxu0 0.0
  %664 = vmatpush.msra.mxu0 0.0
  %665 = vmatpush.msra.mxu0 0.0
  %666 = vmatpush.msra.mxu0 0.0
  %667 = vmatpush.msra.mxu0 0.0
  %668 = vmatpush.msra.mxu0 0.0
  %669 = vmatpush.msra.mxu0 0.0
  %670 = vmatpush.msra.mxu0 %v636
  %671 = vmatpush.msra.mxu0 %v620
  %672 = vmatpush.msra.mxu0 %v604
  %673 = vmatpush.msra.mxu0 %v588
  %674 = vmatpush.msra.mxu0 %v507
  %675 = vmatpush.msra.mxu0 %v572
  %676 = vmatpush.msra.mxu0 %v556
  %677 = vmatpush.msra.mxu0 %v540
  %678 = vmatpush.msra.mxu0 %v524
  %679 = vmatmul.f32.gmra.mxu0 %v641
  %v680 = vpop.f32.mrf.mxu0
  %v681 = vadd.f32 0.0, %v680
  %682 = vdwg.mxu0
  %683 = vmatpush.msra.mxu0 0.0
  %684 = vmatpush.msra.mxu0 0.0
  %685 = vmatpush.msra.mxu0 0.0
  %686 = vmatpush.msra.mxu0 0.0
  %687 = vmatpush.msra.mxu0 0.0
  %688 = vmatpush.msra.mxu0 0.0
  %689 = vmatpush.msra.mxu0 0.0
  %690 = vmatpush.msra.mxu0 %v637
  %691 = vmatpush.msra.mxu0 %v621
  %692 = vmatpush.msra.mxu0 %v605
  %693 = vmatpush.msra.mxu0 %v589
  %694 = vmatpush.msra.mxu0 %v508
  %695 = vmatpush.msra.mxu0 %v573
  %696 = vmatpush.msra.mxu0 %v557
  %697 = vmatpush.msra.mxu0 %v541
  %698 = vmatpush.msra.mxu0 %v525
  %699 = vmatmul.f32.gmra.mxu0 %v641
  %v700 = vpop.f32.mrf.mxu0
  %v701 = vadd.f32 0.0, %v700
  %702 = vdwg.mxu0
  %703 = vmatpush.msra.mxu0 0.0
  %704 = vmatpush.msra.mxu0 0.0
  %705 = vmatpush.msra.mxu0 0.0
  %706 = vmatpush.msra.mxu0 0.0
  %707 = vmatpush.msra.mxu0 0.0
  %708 = vmatpush.msra.mxu0 0.0
  %709 = vmatpush.msra.mxu0 0.0
  %710 = vmatpush.msra.mxu0 %v638
  %711 = vmatpush.msra.mxu0 %v622
  %712 = vmatpush.msra.mxu0 %v606
  %713 = vmatpush.msra.mxu0 %v590
  %714 = vmatpush.msra.mxu0 %v509
  %715 = vmatpush.msra.mxu0 %v574
  %716 = vmatpush.msra.mxu0 %v558
  %717 = vmatpush.msra.mxu0 %v542
  %718 = vmatpush.msra.mxu0 %v526
  %719 = vmatmul.f32.gmra.mxu0 %v641
  %v720 = vpop.f32.mrf.mxu0
  %v721 = vadd.f32 0.0, %v720
  %722 = vdwg.mxu0
  %v723 = vld [vmem:[%s5] sm:$0xff]
  %v724 = vld [vmem:[%s6] sm:$0xff]
  %v725 = vadd.f32 %v661, %v681
  %v726 = vadd.f32 %v725, %v701
  %v727 = vadd.f32 %v726, %v721
  %728 = vadd.xlane.f32.xlu0 %v727
  %v729 = vpop.xlane.xlu0 %728
  %v730 = vmul.f32 %v661, %v661
  %v731 = vmul.f32 %v681, %v681
  %v732 = vmul.f32 %v701, %v701
  %v733 = vmul.f32 %v721, %v721
  %v734 = vadd.f32 %v730, %v731
  %v735 = vadd.f32 %v734, %v732
  %v736 = vadd.f32 %v735, %v733
  %737 = vadd.xlane.f32.xlu0 %v736
  %v738 = vpop.xlane.xlu0 %737
  %v739 = vmul.f32 %v729, 0.001953125
  %v740 = vmul.f32 %v738, 0.001953125
  %v741 = vmul.f32 %v739, %v739
  %v742 = vsub.f32 %v740, %v741
  %v743 = vadd.f32 %v742, 1e-05
  %v744 = vrsqrt.pop %v743
  %v745 = vmul.f32 %v744, %v743
  %v746 = vmul.f32 %v745, %v744
  %v747 = vmul.f32 0.5, %v746
  %v748 = vsub.f32 1.5, %v747
  %v749 = vmul.f32 %v744, %v748
  %vm750 = vweird.f32 %v743
  %vm751 = vweird.f32 %v744
  %vm752 = vmor %vm750, %vm751
  %v753 = vsel %vm752, %v744, %v749
  %v754 = vmul.f32 %v723, %v753
  %v755 = vmul.f32 %v739, %v754
  %v756 = vsub.f32 %v724, %v755
  %758 = vset.pattern.permute.xlu0 0
  %759 = vperm.xlu0 %758, %v754
  %v760 = vpop.permute.xlu0 %759
  %v762 = vmul.f32 %v661, %v760
  %v763 = vmul.f32 %v681, %v760
  %v764 = vmul.f32 %v701, %v760
  %v765 = vmul.f32 %v721, %v760
  %767 = vset.pattern.permute.xlu0 0
  %768 = vperm.xlu0 %767, %v756
  %v769 = vpop.permute.xlu0 %768
  %v771 = vadd.f32 %v762, %v769
  %v772 = vadd.f32 %v763, %v769
  %v773 = vadd.f32 %v764, %v769
  %v774 = vadd.f32 %v765, %v769
  %v775 = vmax.f32 %v771, 0.0
  %v776 = vmax.f32 %v772, 0.0
  %v777 = vmax.f32 %v773, 0.0
  %v778 = vmax.f32 %v774, 0.0
  %779 = vst [vmem:[%s8] sm:$0xff] %v775
  %780 = vst [vmem:[%s8 + $0x8] sm:$0xff] %v776
  %s781 = scalar_lea.vmem %s8, 16
  %782 = vst [vmem:[%s781] sm:$0xff] %v777
  %783 = vst [vmem:[%s781 + $0x8] sm:$0xff] %v778
  %784 = vxpose.xlu0.b32.start [1/16] %v775, 128
  %785 = vxpose.xlu0.b32.cont [2/16] 0.0, 128
  %786 = vxpose.xlu0.b32.cont [3/16] 0.0, 128
  %787 = vxpose.xlu0.b32.cont [4/16] 0.0, 128
  %788 = vxpose.xlu0.b32.cont [5/16] 0.0, 128
  %789 = vxpose.xlu0.b32.cont [6/16] 0.0, 128
  %790 = vxpose.xlu0.b32.cont [7/16] 0.0, 128
  %791 = vxpose.xlu0.b32.cont [8/16] 0.0, 128
  %792 = vxpose.xlu0.b32.cont [9/16] 0.0, 128
  %793 = vxpose.xlu0.b32.cont [10/16] 0.0, 128
  %794 = vxpose.xlu0.b32.cont [11/16] 0.0, 128
  %795 = vxpose.xlu0.b32.cont [12/16] 0.0, 128
  %796 = vxpose.xlu0.b32.cont [13/16] 0.0, 128
  %797 = vxpose.xlu0.b32.cont [14/16] 0.0, 128
  %798 = vxpose.xlu0.b32.cont [15/16] 0.0, 128
  %799 = vxpose.xlu0.b32.end [16/16] 0.0, 128
  %v800 = vpop.trf.xlu0
  %v801 = vpop.trf.xlu0
  %v802 = vpop.trf.xlu0
  %v803 = vpop.trf.xlu0
  %v804 = vpop.trf.xlu0
  %v805 = vpop.trf.xlu0
  %v806 = vpop.trf.xlu0
  %v807 = vpop.trf.xlu0
  %v808 = vpop.trf.xlu0
  %v809 = vpop.trf.xlu0
  %v810 = vpop.trf.xlu0
  %v811 = vpop.trf.xlu0
  %v812 = vpop.trf.xlu0
  %v813 = vpop.trf.xlu0
  %v814 = vpop.trf.xlu0
  %v815 = vpop.trf.xlu0
  %816 = vxpose.xlu0.b32.start [1/16] %v776, 128
  %817 = vxpose.xlu0.b32.cont [2/16] 0.0, 128
  %818 = vxpose.xlu0.b32.cont [3/16] 0.0, 128
  %819 = vxpose.xlu0.b32.cont [4/16] 0.0, 128
  %820 = vxpose.xlu0.b32.cont [5/16] 0.0, 128
  %821 = vxpose.xlu0.b32.cont [6/16] 0.0, 128
  %822 = vxpose.xlu0.b32.cont [7/16] 0.0, 128
  %823 = vxpose.xlu0.b32.cont [8/16] 0.0, 128
  %824 = vxpose.xlu0.b32.cont [9/16] 0.0, 128
  %825 = vxpose.xlu0.b32.cont [10/16] 0.0, 128
  %826 = vxpose.xlu0.b32.cont [11/16] 0.0, 128
  %827 = vxpose.xlu0.b32.cont [12/16] 0.0, 128
  %828 = vxpose.xlu0.b32.cont [13/16] 0.0, 128
  %829 = vxpose.xlu0.b32.cont [14/16] 0.0, 128
  %830 = vxpose.xlu0.b32.cont [15/16] 0.0, 128
  %831 = vxpose.xlu0.b32.end [16/16] 0.0, 128
  %v832 = vpop.trf.xlu0
  %v833 = vpop.trf.xlu0
  %v834 = vpop.trf.xlu0
  %v835 = vpop.trf.xlu0
  %v836 = vpop.trf.xlu0
  %v837 = vpop.trf.xlu0
  %v838 = vpop.trf.xlu0
  %v839 = vpop.trf.xlu0
  %v840 = vpop.trf.xlu0
  %v841 = vpop.trf.xlu0
  %v842 = vpop.trf.xlu0
  %v843 = vpop.trf.xlu0
  %v844 = vpop.trf.xlu0
  %v845 = vpop.trf.xlu0
  %v846 = vpop.trf.xlu0
  %v847 = vpop.trf.xlu0
  %vm848 = vcmask 64512
  %v849 = vsel %vm848, %v800, -inf
  %v850 = vsel %vm848, %v802, -inf
  %v851 = vmax.f32 %v849, %v850
  %v852 = vsel %vm848, %v801, -inf
  %v853 = vsel %vm848, %v803, -inf
  %v854 = vmax.f32 %v852, %v853
  %v855 = vsel %vm848, %v804, -inf
  %v856 = vsel %vm848, %v806, -inf
  %v857 = vmax.f32 %v855, %v856
  %v858 = vsel %vm848, %v805, -inf
  %v859 = vsel %vm848, %v807, -inf
  %v860 = vmax.f32 %v858, %v859
  %v861 = vsel %vm848, %v808, -inf
  %v862 = vsel %vm848, %v810, -inf
  %v863 = vmax.f32 %v861, %v862
  %v864 = vsel %vm848, %v809, -inf
  %v865 = vsel %vm848, %v811, -inf
  %v866 = vmax.f32 %v864, %v865
  %v867 = vsel %vm848, %v812, -inf
  %v868 = vsel %vm848, %v814, -inf
  %v869 = vmax.f32 %v867, %v868
  %v870 = vsel %vm848, %v813, -inf
  %v871 = vsel %vm848, %v815, -inf
  %v872 = vmax.f32 %v870, %v871
  %v873 = vsel %vm848, %v832, -inf
  %v874 = vsel %vm848, %v834, -inf
  %v875 = vmax.f32 %v873, %v874
  %v876 = vsel %vm848, %v833, -inf
  %v877 = vsel %vm848, %v835, -inf
  %v878 = vmax.f32 %v876, %v877
  %v879 = vsel %vm848, %v836, -inf
  %v880 = vsel %vm848, %v838, -inf
  %v881 = vmax.f32 %v879, %v880
  %v882 = vsel %vm848, %v837, -inf
  %v883 = vsel %vm848, %v839, -inf
  %v884 = vmax.f32 %v882, %v883
  %v885 = vsel %vm848, %v840, -inf
  %v886 = vsel %vm848, %v842, -inf
  %v887 = vmax.f32 %v885, %v886
  %v888 = vsel %vm848, %v841, -inf
  %v889 = vsel %vm848, %v843, -inf
  %v890 = vmax.f32 %v888, %v889
  %v891 = vsel %vm848, %v844, -inf
  %v892 = vsel %vm848, %v846, -inf
  %v893 = vmax.f32 %v891, %v892
  %v894 = vsel %vm848, %v845, -inf
  %v895 = vsel %vm848, %v847, -inf
  %v896 = vmax.f32 %v894, %v895
  %v913 = vrot.slane %v851, 2
  %v914 = vrot.slane %v851, 4
  %v915 = vrot.slane %v851, 6
  %v916 = vrot.slane %v854, 2
  %v917 = vrot.slane %v854, 4
  %v918 = vrot.slane %v854, 6
  %v919 = vrot.slane %v857, 2
  %v920 = vrot.slane %v857, 4
  %v921 = vrot.slane %v857, 6
  %v922 = vrot.slane %v860, 2
  %v923 = vrot.slane %v860, 4
  %v924 = vrot.slane %v860, 6
  %v925 = vrot.slane %v863, 2
  %v926 = vrot.slane %v863, 4
  %v927 = vrot.slane %v863, 6
  %v928 = vrot.slane %v866, 2
  %v929 = vrot.slane %v866, 4
  %v930 = vrot.slane %v866, 6
  %v931 = vrot.slane %v869, 2
  %v932 = vrot.slane %v869, 4
  %v933 = vrot.slane %v869, 6
  %v934 = vrot.slane %v872, 2
  %v935 = vrot.slane %v872, 4
  %v936 = vrot.slane %v872, 6
  %v937 = vrot.slane %v875, 2
  %v938 = vrot.slane %v875, 4
  %v939 = vrot.slane %v875, 6
  %v940 = vrot.slane %v878, 2
  %v941 = vrot.slane %v878, 4
  %v942 = vrot.slane %v878, 6
  %v943 = vrot.slane %v881, 2
  %v944 = vrot.slane %v881, 4
  %v945 = vrot.slane %v881, 6
  %v946 = vrot.slane %v884, 2
  %v947 = vrot.slane %v884, 4
  %v948 = vrot.slane %v884, 6
  %v949 = vrot.slane %v887, 2
  %v950 = vrot.slane %v887, 4
  %v951 = vrot.slane %v887, 6
  %v952 = vrot.slane %v890, 2
  %v953 = vrot.slane %v890, 4
  %v954 = vrot.slane %v890, 6
  %v955 = vrot.slane %v893, 2
  %v956 = vrot.slane %v893, 4
  %v957 = vrot.slane %v893, 6
  %v958 = vrot.slane %v896, 2
  %v959 = vrot.slane %v896, 4
  %v960 = vrot.slane %v896, 6
  %vm1009 = vcmask 58368
  %v1010 = vsel %vm1009, %v851, -inf
  %v1011 = vrot.slane %v1010, 4
  %v1012 = vmax.f32 %v1010, %v1011
  %v1013 = vrot.slane %v1012, 2
  %v1014 = vmax.f32 %v1012, %v1013
  %v1015 = vrot.slane %v1014, 1
  %v1016 = vmax.f32 %v1014, %v1015
  %v1017 = vsel %vm1009, %v913, -inf
  %v1018 = vrot.slane %v1017, 4
  %v1019 = vmax.f32 %v1017, %v1018
  %v1020 = vrot.slane %v1019, 2
  %v1021 = vmax.f32 %v1019, %v1020
  %v1022 = vrot.slane %v1021, 1
  %v1023 = vmax.f32 %v1021, %v1022
  %v1024 = vsel %vm1009, %v914, -inf
  %v1025 = vrot.slane %v1024, 4
  %v1026 = vmax.f32 %v1024, %v1025
  %v1027 = vrot.slane %v1026, 2
  %v1028 = vmax.f32 %v1026, %v1027
  %v1029 = vrot.slane %v1028, 1
  %v1030 = vmax.f32 %v1028, %v1029
  %v1031 = vsel %vm1009, %v915, -inf
  %v1032 = vrot.slane %v1031, 4
  %v1033 = vmax.f32 %v1031, %v1032
  %v1034 = vrot.slane %v1033, 2
  %v1035 = vmax.f32 %v1033, %v1034
  %v1036 = vrot.slane %v1035, 1
  %v1037 = vmax.f32 %v1035, %v1036
  %v1038 = vsel %vm1009, %v854, -inf
  %v1039 = vrot.slane %v1038, 4
  %v1040 = vmax.f32 %v1038, %v1039
  %v1041 = vrot.slane %v1040, 2
  %v1042 = vmax.f32 %v1040, %v1041
  %v1043 = vrot.slane %v1042, 1
  %v1044 = vmax.f32 %v1042, %v1043
  %v1045 = vsel %vm1009, %v916, -inf
  %v1046 = vrot.slane %v1045, 4
  %v1047 = vmax.f32 %v1045, %v1046
  %v1048 = vrot.slane %v1047, 2
  %v1049 = vmax.f32 %v1047, %v1048
  %v1050 = vrot.slane %v1049, 1
  %v1051 = vmax.f32 %v1049, %v1050
  %v1052 = vsel %vm1009, %v917, -inf
  %v1053 = vrot.slane %v1052, 4
  %v1054 = vmax.f32 %v1052, %v1053
  %v1055 = vrot.slane %v1054, 2
  %v1056 = vmax.f32 %v1054, %v1055
  %v1057 = vrot.slane %v1056, 1
  %v1058 = vmax.f32 %v1056, %v1057
  %v1059 = vsel %vm1009, %v918, -inf
  %v1060 = vrot.slane %v1059, 4
  %v1061 = vmax.f32 %v1059, %v1060
  %v1062 = vrot.slane %v1061, 2
  %v1063 = vmax.f32 %v1061, %v1062
  %v1064 = vrot.slane %v1063, 1
  %v1065 = vmax.f32 %v1063, %v1064
  %v1066 = vsel %vm1009, %v857, -inf
  %v1067 = vrot.slane %v1066, 4
  %v1068 = vmax.f32 %v1066, %v1067
  %v1069 = vrot.slane %v1068, 2
  %v1070 = vmax.f32 %v1068, %v1069
  %v1071 = vrot.slane %v1070, 1
  %v1072 = vmax.f32 %v1070, %v1071
  %v1073 = vsel %vm1009, %v919, -inf
  %v1074 = vrot.slane %v1073, 4
  %v1075 = vmax.f32 %v1073, %v1074
  %v1076 = vrot.slane %v1075, 2
  %v1077 = vmax.f32 %v1075, %v1076
  %v1078 = vrot.slane %v1077, 1
  %v1079 = vmax.f32 %v1077, %v1078
  %v1080 = vsel %vm1009, %v920, -inf
  %v1081 = vrot.slane %v1080, 4
  %v1082 = vmax.f32 %v1080, %v1081
  %v1083 = vrot.slane %v1082, 2
  %v1084 = vmax.f32 %v1082, %v1083
  %v1085 = vrot.slane %v1084, 1
  %v1086 = vmax.f32 %v1084, %v1085
  %v1087 = vsel %vm1009, %v921, -inf
  %v1088 = vrot.slane %v1087, 4
  %v1089 = vmax.f32 %v1087, %v1088
  %v1090 = vrot.slane %v1089, 2
  %v1091 = vmax.f32 %v1089, %v1090
  %v1092 = vrot.slane %v1091, 1
  %v1093 = vmax.f32 %v1091, %v1092
  %v1094 = vsel %vm1009, %v860, -inf
  %v1095 = vrot.slane %v1094, 4
  %v1096 = vmax.f32 %v1094, %v1095
  %v1097 = vrot.slane %v1096, 2
  %v1098 = vmax.f32 %v1096, %v1097
  %v1099 = vrot.slane %v1098, 1
  %v1100 = vmax.f32 %v1098, %v1099
  %v1101 = vsel %vm1009, %v922, -inf
  %v1102 = vrot.slane %v1101, 4
  %v1103 = vmax.f32 %v1101, %v1102
  %v1104 = vrot.slane %v1103, 2
  %v1105 = vmax.f32 %v1103, %v1104
  %v1106 = vrot.slane %v1105, 1
  %v1107 = vmax.f32 %v1105, %v1106
  %v1108 = vsel %vm1009, %v923, -inf
  %v1109 = vrot.slane %v1108, 4
  %v1110 = vmax.f32 %v1108, %v1109
  %v1111 = vrot.slane %v1110, 2
  %v1112 = vmax.f32 %v1110, %v1111
  %v1113 = vrot.slane %v1112, 1
  %v1114 = vmax.f32 %v1112, %v1113
  %v1115 = vsel %vm1009, %v924, -inf
  %v1116 = vrot.slane %v1115, 4
  %v1117 = vmax.f32 %v1115, %v1116
  %v1118 = vrot.slane %v1117, 2
  %v1119 = vmax.f32 %v1117, %v1118
  %v1120 = vrot.slane %v1119, 1
  %v1121 = vmax.f32 %v1119, %v1120
  %v1122 = vsel %vm1009, %v863, -inf
  %v1123 = vrot.slane %v1122, 4
  %v1124 = vmax.f32 %v1122, %v1123
  %v1125 = vrot.slane %v1124, 2
  %v1126 = vmax.f32 %v1124, %v1125
  %v1127 = vrot.slane %v1126, 1
  %v1128 = vmax.f32 %v1126, %v1127
  %v1129 = vsel %vm1009, %v925, -inf
  %v1130 = vrot.slane %v1129, 4
  %v1131 = vmax.f32 %v1129, %v1130
  %v1132 = vrot.slane %v1131, 2
  %v1133 = vmax.f32 %v1131, %v1132
  %v1134 = vrot.slane %v1133, 1
  %v1135 = vmax.f32 %v1133, %v1134
  %v1136 = vsel %vm1009, %v926, -inf
  %v1137 = vrot.slane %v1136, 4
  %v1138 = vmax.f32 %v1136, %v1137
  %v1139 = vrot.slane %v1138, 2
  %v1140 = vmax.f32 %v1138, %v1139
  %v1141 = vrot.slane %v1140, 1
  %v1142 = vmax.f32 %v1140, %v1141
  %v1143 = vsel %vm1009, %v927, -inf
  %v1144 = vrot.slane %v1143, 4
  %v1145 = vmax.f32 %v1143, %v1144
  %v1146 = vrot.slane %v1145, 2
  %v1147 = vmax.f32 %v1145, %v1146
  %v1148 = vrot.slane %v1147, 1
  %v1149 = vmax.f32 %v1147, %v1148
  %v1150 = vsel %vm1009, %v866, -inf
  %v1151 = vrot.slane %v1150, 4
  %v1152 = vmax.f32 %v1150, %v1151
  %v1153 = vrot.slane %v1152, 2
  %v1154 = vmax.f32 %v1152, %v1153
  %v1155 = vrot.slane %v1154, 1
  %v1156 = vmax.f32 %v1154, %v1155
  %v1157 = vsel %vm1009, %v928, -inf
  %v1158 = vrot.slane %v1157, 4
  %v1159 = vmax.f32 %v1157, %v1158
  %v1160 = vrot.slane %v1159, 2
  %v1161 = vmax.f32 %v1159, %v1160
  %v1162 = vrot.slane %v1161, 1
  %v1163 = vmax.f32 %v1161, %v1162
  %v1164 = vsel %vm1009, %v929, -inf
  %v1165 = vrot.slane %v1164, 4
  %v1166 = vmax.f32 %v1164, %v1165
  %v1167 = vrot.slane %v1166, 2
  %v1168 = vmax.f32 %v1166, %v1167
  %v1169 = vrot.slane %v1168, 1
  %v1170 = vmax.f32 %v1168, %v1169
  %v1171 = vsel %vm1009, %v930, -inf
  %v1172 = vrot.slane %v1171, 4
  %v1173 = vmax.f32 %v1171, %v1172
  %v1174 = vrot.slane %v1173, 2
  %v1175 = vmax.f32 %v1173, %v1174
  %v1176 = vrot.slane %v1175, 1
  %v1177 = vmax.f32 %v1175, %v1176
  %v1178 = vsel %vm1009, %v869, -inf
  %v1179 = vrot.slane %v1178, 4
  %v1180 = vmax.f32 %v1178, %v1179
  %v1181 = vrot.slane %v1180, 2
  %v1182 = vmax.f32 %v1180, %v1181
  %v1183 = vrot.slane %v1182, 1
  %v1184 = vmax.f32 %v1182, %v1183
  %v1185 = vsel %vm1009, %v931, -inf
  %v1186 = vrot.slane %v1185, 4
  %v1187 = vmax.f32 %v1185, %v1186
  %v1188 = vrot.slane %v1187, 2
  %v1189 = vmax.f32 %v1187, %v1188
  %v1190 = vrot.slane %v1189, 1
  %v1191 = vmax.f32 %v1189, %v1190
  %v1192 = vsel %vm1009, %v932, -inf
  %v1193 = vrot.slane %v1192, 4
  %v1194 = vmax.f32 %v1192, %v1193
  %v1195 = vrot.slane %v1194, 2
  %v1196 = vmax.f32 %v1194, %v1195
  %v1197 = vrot.slane %v1196, 1
  %v1198 = vmax.f32 %v1196, %v1197
  %v1199 = vsel %vm1009, %v933, -inf
  %v1200 = vrot.slane %v1199, 4
  %v1201 = vmax.f32 %v1199, %v1200
  %v1202 = vrot.slane %v1201, 2
  %v1203 = vmax.f32 %v1201, %v1202
  %v1204 = vrot.slane %v1203, 1
  %v1205 = vmax.f32 %v1203, %v1204
  %v1206 = vsel %vm1009, %v872, -inf
  %v1207 = vrot.slane %v1206, 4
  %v1208 = vmax.f32 %v1206, %v1207
  %v1209 = vrot.slane %v1208, 2
  %v1210 = vmax.f32 %v1208, %v1209
  %v1211 = vrot.slane %v1210, 1
  %v1212 = vmax.f32 %v1210, %v1211
  %v1213 = vsel %vm1009, %v934, -inf
  %v1214 = vrot.slane %v1213, 4
  %v1215 = vmax.f32 %v1213, %v1214
  %v1216 = vrot.slane %v1215, 2
  %v1217 = vmax.f32 %v1215, %v1216
  %v1218 = vrot.slane %v1217, 1
  %v1219 = vmax.f32 %v1217, %v1218
  %v1220 = vsel %vm1009, %v935, -inf
  %v1221 = vrot.slane %v1220, 4
  %v1222 = vmax.f32 %v1220, %v1221
  %v1223 = vrot.slane %v1222, 2
  %v1224 = vmax.f32 %v1222, %v1223
  %v1225 = vrot.slane %v1224, 1
  %v1226 = vmax.f32 %v1224, %v1225
  %v1227 = vsel %vm1009, %v936, -inf
  %v1228 = vrot.slane %v1227, 4
  %v1229 = vmax.f32 %v1227, %v1228
  %v1230 = vrot.slane %v1229, 2
  %v1231 = vmax.f32 %v1229, %v1230
  %v1232 = vrot.slane %v1231, 1
  %v1233 = vmax.f32 %v1231, %v1232
  %v1234 = vsel %vm1009, %v875, -inf
  %v1235 = vrot.slane %v1234, 4
  %v1236 = vmax.f32 %v1234, %v1235
  %v1237 = vrot.slane %v1236, 2
  %v1238 = vmax.f32 %v1236, %v1237
  %v1239 = vrot.slane %v1238, 1
  %v1240 = vmax.f32 %v1238, %v1239
  %v1241 = vsel %vm1009, %v937, -inf
  %v1242 = vrot.slane %v1241, 4
  %v1243 = vmax.f32 %v1241, %v1242
  %v1244 = vrot.slane %v1243, 2
  %v1245 = vmax.f32 %v1243, %v1244
  %v1246 = vrot.slane %v1245, 1
  %v1247 = vmax.f32 %v1245, %v1246
  %v1248 = vsel %vm1009, %v938, -inf
  %v1249 = vrot.slane %v1248, 4
  %v1250 = vmax.f32 %v1248, %v1249
  %v1251 = vrot.slane %v1250, 2
  %v1252 = vmax.f32 %v1250, %v1251
  %v1253 = vrot.slane %v1252, 1
  %v1254 = vmax.f32 %v1252, %v1253
  %v1255 = vsel %vm1009, %v939, -inf
  %v1256 = vrot.slane %v1255, 4
  %v1257 = vmax.f32 %v1255, %v1256
  %v1258 = vrot.slane %v1257, 2
  %v1259 = vmax.f32 %v1257, %v1258
  %v1260 = vrot.slane %v1259, 1
  %v1261 = vmax.f32 %v1259, %v1260
  %v1262 = vsel %vm1009, %v878, -inf
  %v1263 = vrot.slane %v1262, 4
  %v1264 = vmax.f32 %v1262, %v1263
  %v1265 = vrot.slane %v1264, 2
  %v1266 = vmax.f32 %v1264, %v1265
  %v1267 = vrot.slane %v1266, 1
  %v1268 = vmax.f32 %v1266, %v1267
  %v1269 = vsel %vm1009, %v940, -inf
  %v1270 = vrot.slane %v1269, 4
  %v1271 = vmax.f32 %v1269, %v1270
  %v1272 = vrot.slane %v1271, 2
  %v1273 = vmax.f32 %v1271, %v1272
  %v1274 = vrot.slane %v1273, 1
  %v1275 = vmax.f32 %v1273, %v1274
  %v1276 = vsel %vm1009, %v941, -inf
  %v1277 = vrot.slane %v1276, 4
  %v1278 = vmax.f32 %v1276, %v1277
  %v1279 = vrot.slane %v1278, 2
  %v1280 = vmax.f32 %v1278, %v1279
  %v1281 = vrot.slane %v1280, 1
  %v1282 = vmax.f32 %v1280, %v1281
  %v1283 = vsel %vm1009, %v942, -inf
  %v1284 = vrot.slane %v1283, 4
  %v1285 = vmax.f32 %v1283, %v1284
  %v1286 = vrot.slane %v1285, 2
  %v1287 = vmax.f32 %v1285, %v1286
  %v1288 = vrot.slane %v1287, 1
  %v1289 = vmax.f32 %v1287, %v1288
  %v1290 = vsel %vm1009, %v881, -inf
  %v1291 = vrot.slane %v1290, 4
  %v1292 = vmax.f32 %v1290, %v1291
  %v1293 = vrot.slane %v1292, 2
  %v1294 = vmax.f32 %v1292, %v1293
  %v1295 = vrot.slane %v1294, 1
  %v1296 = vmax.f32 %v1294, %v1295
  %v1297 = vsel %vm1009, %v943, -inf
  %v1298 = vrot.slane %v1297, 4
  %v1299 = vmax.f32 %v1297, %v1298
  %v1300 = vrot.slane %v1299, 2
  %v1301 = vmax.f32 %v1299, %v1300
  %v1302 = vrot.slane %v1301, 1
  %v1303 = vmax.f32 %v1301, %v1302
  %v1304 = vsel %vm1009, %v944, -inf
  %v1305 = vrot.slane %v1304, 4
  %v1306 = vmax.f32 %v1304, %v1305
  %v1307 = vrot.slane %v1306, 2
  %v1308 = vmax.f32 %v1306, %v1307
  %v1309 = vrot.slane %v1308, 1
  %v1310 = vmax.f32 %v1308, %v1309
  %v1311 = vsel %vm1009, %v945, -inf
  %v1312 = vrot.slane %v1311, 4
  %v1313 = vmax.f32 %v1311, %v1312
  %v1314 = vrot.slane %v1313, 2
  %v1315 = vmax.f32 %v1313, %v1314
  %v1316 = vrot.slane %v1315, 1
  %v1317 = vmax.f32 %v1315, %v1316
  %v1318 = vsel %vm1009, %v884, -inf
  %v1319 = vrot.slane %v1318, 4
  %v1320 = vmax.f32 %v1318, %v1319
  %v1321 = vrot.slane %v1320, 2
  %v1322 = vmax.f32 %v1320, %v1321
  %v1323 = vrot.slane %v1322, 1
  %v1324 = vmax.f32 %v1322, %v1323
  %v1325 = vsel %vm1009, %v946, -inf
  %v1326 = vrot.slane %v1325, 4
  %v1327 = vmax.f32 %v1325, %v1326
  %v1328 = vrot.slane %v1327, 2
  %v1329 = vmax.f32 %v1327, %v1328
  %v1330 = vrot.slane %v1329, 1
  %v1331 = vmax.f32 %v1329, %v1330
  %v1332 = vsel %vm1009, %v947, -inf
  %v1333 = vrot.slane %v1332, 4
  %v1334 = vmax.f32 %v1332, %v1333
  %v1335 = vrot.slane %v1334, 2
  %v1336 = vmax.f32 %v1334, %v1335
  %v1337 = vrot.slane %v1336, 1
  %v1338 = vmax.f32 %v1336, %v1337
  %v1339 = vsel %vm1009, %v948, -inf
  %v1340 = vrot.slane %v1339, 4
  %v1341 = vmax.f32 %v1339, %v1340
  %v1342 = vrot.slane %v1341, 2
  %v1343 = vmax.f32 %v1341, %v1342
  %v1344 = vrot.slane %v1343, 1
  %v1345 = vmax.f32 %v1343, %v1344
  %v1346 = vsel %vm1009, %v887, -inf
  %v1347 = vrot.slane %v1346, 4
  %v1348 = vmax.f32 %v1346, %v1347
  %v1349 = vrot.slane %v1348, 2
  %v1350 = vmax.f32 %v1348, %v1349
  %v1351 = vrot.slane %v1350, 1
  %v1352 = vmax.f32 %v1350, %v1351
  %v1353 = vsel %vm1009, %v949, -inf
  %v1354 = vrot.slane %v1353, 4
  %v1355 = vmax.f32 %v1353, %v1354
  %v1356 = vrot.slane %v1355, 2
  %v1357 = vmax.f32 %v1355, %v1356
  %v1358 = vrot.slane %v1357, 1
  %v1359 = vmax.f32 %v1357, %v1358
  %v1360 = vsel %vm1009, %v950, -inf
  %v1361 = vrot.slane %v1360, 4
  %v1362 = vmax.f32 %v1360, %v1361
  %v1363 = vrot.slane %v1362, 2
  %v1364 = vmax.f32 %v1362, %v1363
  %v1365 = vrot.slane %v1364, 1
  %v1366 = vmax.f32 %v1364, %v1365
  %v1367 = vsel %vm1009, %v951, -inf
  %v1368 = vrot.slane %v1367, 4
  %v1369 = vmax.f32 %v1367, %v1368
  %v1370 = vrot.slane %v1369, 2
  %v1371 = vmax.f32 %v1369, %v1370
  %v1372 = vrot.slane %v1371, 1
  %v1373 = vmax.f32 %v1371, %v1372
  %v1374 = vsel %vm1009, %v890, -inf
  %v1375 = vrot.slane %v1374, 4
  %v1376 = vmax.f32 %v1374, %v1375
  %v1377 = vrot.slane %v1376, 2
  %v1378 = vmax.f32 %v1376, %v1377
  %v1379 = vrot.slane %v1378, 1
  %v1380 = vmax.f32 %v1378, %v1379
  %v1381 = vsel %vm1009, %v952, -inf
  %v1382 = vrot.slane %v1381, 4
  %v1383 = vmax.f32 %v1381, %v1382
  %v1384 = vrot.slane %v1383, 2
  %v1385 = vmax.f32 %v1383, %v1384
  %v1386 = vrot.slane %v1385, 1
  %v1387 = vmax.f32 %v1385, %v1386
  %v1388 = vsel %vm1009, %v953, -inf
  %v1389 = vrot.slane %v1388, 4
  %v1390 = vmax.f32 %v1388, %v1389
  %v1391 = vrot.slane %v1390, 2
  %v1392 = vmax.f32 %v1390, %v1391
  %v1393 = vrot.slane %v1392, 1
  %v1394 = vmax.f32 %v1392, %v1393
  %v1395 = vsel %vm1009, %v954, -inf
  %v1396 = vrot.slane %v1395, 4
  %v1397 = vmax.f32 %v1395, %v1396
  %v1398 = vrot.slane %v1397, 2
  %v1399 = vmax.f32 %v1397, %v1398
  %v1400 = vrot.slane %v1399, 1
  %v1401 = vmax.f32 %v1399, %v1400
  %v1402 = vsel %vm1009, %v893, -inf
  %v1403 = vrot.slane %v1402, 4
  %v1404 = vmax.f32 %v1402, %v1403
  %v1405 = vrot.slane %v1404, 2
  %v1406 = vmax.f32 %v1404, %v1405
  %v1407 = vrot.slane %v1406, 1
  %v1408 = vmax.f32 %v1406, %v1407
  %v1409 = vsel %vm1009, %v955, -inf
  %v1410 = vrot.slane %v1409, 4
  %v1411 = vmax.f32 %v1409, %v1410
  %v1412 = vrot.slane %v1411, 2
  %v1413 = vmax.f32 %v1411, %v1412
  %v1414 = vrot.slane %v1413, 1
  %v1415 = vmax.f32 %v1413, %v1414
  %v1416 = vsel %vm1009, %v956, -inf
  %v1417 = vrot.slane %v1416, 4
  %v1418 = vmax.f32 %v1416, %v1417
  %v1419 = vrot.slane %v1418, 2
  %v1420 = vmax.f32 %v1418, %v1419
  %v1421 = vrot.slane %v1420, 1
  %v1422 = vmax.f32 %v1420, %v1421
  %v1423 = vsel %vm1009, %v957, -inf
  %v1424 = vrot.slane %v1423, 4
  %v1425 = vmax.f32 %v1423, %v1424
  %v1426 = vrot.slane %v1425, 2
  %v1427 = vmax.f32 %v1425, %v1426
  %v1428 = vrot.slane %v1427, 1
  %v1429 = vmax.f32 %v1427, %v1428
  %v1430 = vsel %vm1009, %v896, -inf
  %v1431 = vrot.slane %v1430, 4
  %v1432 = vmax.f32 %v1430, %v1431
  %v1433 = vrot.slane %v1432, 2
  %v1434 = vmax.f32 %v1432, %v1433
  %v1435 = vrot.slane %v1434, 1
  %v1436 = vmax.f32 %v1434, %v1435
  %v1437 = vsel %vm1009, %v958, -inf
  %v1438 = vrot.slane %v1437, 4
  %v1439 = vmax.f32 %v1437, %v1438
  %v1440 = vrot.slane %v1439, 2
  %v1441 = vmax.f32 %v1439, %v1440
  %v1442 = vrot.slane %v1441, 1
  %v1443 = vmax.f32 %v1441, %v1442
  %v1444 = vsel %vm1009, %v959, -inf
  %v1445 = vrot.slane %v1444, 4
  %v1446 = vmax.f32 %v1444, %v1445
  %v1447 = vrot.slane %v1446, 2
  %v1448 = vmax.f32 %v1446, %v1447
  %v1449 = vrot.slane %v1448, 1
  %v1450 = vmax.f32 %v1448, %v1449
  %v1451 = vsel %vm1009, %v960, -inf
  %v1452 = vrot.slane %v1451, 4
  %v1453 = vmax.f32 %v1451, %v1452
  %v1454 = vrot.slane %v1453, 2
  %v1455 = vmax.f32 %v1453, %v1454
  %v1456 = vrot.slane %v1455, 1
  %v1457 = vmax.f32 %v1455, %v1456
  %vm1522 = vcmask 1041409
  %v1523 = vsel %vm1522, %v1023, %v1016
  %vm1524 = vcmask 1042434
  %v1525 = vsel %vm1524, %v1030, %v1523
  %vm1526 = vcmask 1043459
  %v1527 = vsel %vm1526, %v1037, %v1525
  %vm1528 = vcmask 1044484
  %v1529 = vsel %vm1528, %v1044, %v1527
  %vm1530 = vcmask 1045509
  %v1531 = vsel %vm1530, %v1051, %v1529
  %vm1532 = vcmask 1046534
  %v1533 = vsel %vm1532, %v1058, %v1531
  %vm1534 = vcmask 1047559
  %v1535 = vsel %vm1534, %v1065, %v1533
  %v1536 = vsel %vm1522, %v1079, %v1072
  %v1537 = vsel %vm1524, %v1086, %v1536
  %v1538 = vsel %vm1526, %v1093, %v1537
  %v1539 = vsel %vm1528, %v1100, %v1538
  %v1540 = vsel %vm1530, %v1107, %v1539
  %v1541 = vsel %vm1532, %v1114, %v1540
  %v1542 = vsel %vm1534, %v1121, %v1541
  %v1543 = vsel %vm1522, %v1135, %v1128
  %v1544 = vsel %vm1524, %v1142, %v1543
  %v1545 = vsel %vm1526, %v1149, %v1544
  %v1546 = vsel %vm1528, %v1156, %v1545
  %v1547 = vsel %vm1530, %v1163, %v1546
  %v1548 = vsel %vm1532, %v1170, %v1547
  %v1549 = vsel %vm1534, %v1177, %v1548
  %v1550 = vsel %vm1522, %v1191, %v1184
  %v1551 = vsel %vm1524, %v1198, %v1550
  %v1552 = vsel %vm1526, %v1205, %v1551
  %v1553 = vsel %vm1528, %v1212, %v1552
  %v1554 = vsel %vm1530, %v1219, %v1553
  %v1555 = vsel %vm1532, %v1226, %v1554
  %v1556 = vsel %vm1534, %v1233, %v1555
  %v1557 = vsel %vm1522, %v1247, %v1240
  %v1558 = vsel %vm1524, %v1254, %v1557
  %v1559 = vsel %vm1526, %v1261, %v1558
  %v1560 = vsel %vm1528, %v1268, %v1559
  %v1561 = vsel %vm1530, %v1275, %v1560
  %v1562 = vsel %vm1532, %v1282, %v1561
  %v1563 = vsel %vm1534, %v1289, %v1562
  %v1564 = vsel %vm1522, %v1303, %v1296
  %v1565 = vsel %vm1524, %v1310, %v1564
  %v1566 = vsel %vm1526, %v1317, %v1565
  %v1567 = vsel %vm1528, %v1324, %v1566
  %v1568 = vsel %vm1530, %v1331, %v1567
  %v1569 = vsel %vm1532, %v1338, %v1568
  %v1570 = vsel %vm1534, %v1345, %v1569
  %v1571 = vsel %vm1522, %v1359, %v1352
  %v1572 = vsel %vm1524, %v1366, %v1571
  %v1573 = vsel %vm1526, %v1373, %v1572
  %v1574 = vsel %vm1528, %v1380, %v1573
  %v1575 = vsel %vm1530, %v1387, %v1574
  %v1576 = vsel %vm1532, %v1394, %v1575
  %v1577 = vsel %vm1534, %v1401, %v1576
  %v1578 = vsel %vm1522, %v1415, %v1408
  %v1579 = vsel %vm1524, %v1422, %v1578
  %v1580 = vsel %vm1526, %v1429, %v1579
  %v1581 = vsel %vm1528, %v1436, %v1580
  %v1582 = vsel %vm1530, %v1443, %v1581
  %v1583 = vsel %vm1532, %v1450, %v1582
  %v1584 = vsel %vm1534, %v1457, %v1583
  %1593 = vxpose.xlu0.b32.start [1/16] %v1535, 128
  %1594 = vxpose.xlu0.b32.cont [2/16] %v1542, 128
  %1595 = vxpose.xlu0.b32.cont [3/16] %v1549, 128
  %1596 = vxpose.xlu0.b32.cont [4/16] %v1556, 128
  %1597 = vxpose.xlu0.b32.cont [5/16] %v1563, 128
  %1598 = vxpose.xlu0.b32.cont [6/16] %v1570, 128
  %1599 = vxpose.xlu0.b32.cont [7/16] %v1577, 128
  %1600 = vxpose.xlu0.b32.cont [8/16] %v1584, 128
  %1601 = vxpose.xlu0.b32.cont [9/16] 0.0, 128
  %1602 = vxpose.xlu0.b32.cont [10/16] 0.0, 128
  %1603 = vxpose.xlu0.b32.cont [11/16] 0.0, 128
  %1604 = vxpose.xlu0.b32.cont [12/16] 0.0, 128
  %1605 = vxpose.xlu0.b32.cont [13/16] 0.0, 128
  %1606 = vxpose.xlu0.b32.cont [14/16] 0.0, 128
  %1607 = vxpose.xlu0.b32.cont [15/16] 0.0, 128
  %1608 = vxpose.xlu0.b32.end [16/16] 0.0, 128
  %v1609 = vpop.trf.xlu0
  %v1610 = vpop.trf.xlu0
  %v1611 = vpop.trf.xlu0
  %v1612 = vpop.trf.xlu0
  %v1613 = vpop.trf.xlu0
  %v1614 = vpop.trf.xlu0
  %v1615 = vpop.trf.xlu0
  %v1616 = vpop.trf.xlu0
  %v1617 = vpop.trf.xlu0
  %v1618 = vpop.trf.xlu0
  %v1619 = vpop.trf.xlu0
  %v1620 = vpop.trf.xlu0
  %v1621 = vpop.trf.xlu0
  %v1622 = vpop.trf.xlu0
  %v1623 = vpop.trf.xlu0
  %v1624 = vpop.trf.xlu0
  %vm1625 = vcmask 523264
  %1626 = vst.msk [vmem:[%s7] sm:$0xff] %vm1625, %v1609
  %1627 = vxpose.xlu0.b32.start [1/16] %v777, 128
  %1628 = vxpose.xlu0.b32.cont [2/16] 0.0, 128
  %1629 = vxpose.xlu0.b32.cont [3/16] 0.0, 128
  %1630 = vxpose.xlu0.b32.cont [4/16] 0.0, 128
  %1631 = vxpose.xlu0.b32.cont [5/16] 0.0, 128
  %1632 = vxpose.xlu0.b32.cont [6/16] 0.0, 128
  %1633 = vxpose.xlu0.b32.cont [7/16] 0.0, 128
  %1634 = vxpose.xlu0.b32.cont [8/16] 0.0, 128
  %1635 = vxpose.xlu0.b32.cont [9/16] 0.0, 128
  %1636 = vxpose.xlu0.b32.cont [10/16] 0.0, 128
  %1637 = vxpose.xlu0.b32.cont [11/16] 0.0, 128
  %1638 = vxpose.xlu0.b32.cont [12/16] 0.0, 128
  %1639 = vxpose.xlu0.b32.cont [13/16] 0.0, 128
  %1640 = vxpose.xlu0.b32.cont [14/16] 0.0, 128
  %1641 = vxpose.xlu0.b32.cont [15/16] 0.0, 128
  %1642 = vxpose.xlu0.b32.end [16/16] 0.0, 128
  %v1643 = vpop.trf.xlu0
  %v1644 = vpop.trf.xlu0
  %v1645 = vpop.trf.xlu0
  %v1646 = vpop.trf.xlu0
  %v1647 = vpop.trf.xlu0
  %v1648 = vpop.trf.xlu0
  %v1649 = vpop.trf.xlu0
  %v1650 = vpop.trf.xlu0
  %v1651 = vpop.trf.xlu0
  %v1652 = vpop.trf.xlu0
  %v1653 = vpop.trf.xlu0
  %v1654 = vpop.trf.xlu0
  %v1655 = vpop.trf.xlu0
  %v1656 = vpop.trf.xlu0
  %v1657 = vpop.trf.xlu0
  %v1658 = vpop.trf.xlu0
  %1659 = vxpose.xlu0.b32.start [1/16] %v778, 128
  %1660 = vxpose.xlu0.b32.cont [2/16] 0.0, 128
  %1661 = vxpose.xlu0.b32.cont [3/16] 0.0, 128
  %1662 = vxpose.xlu0.b32.cont [4/16] 0.0, 128
  %1663 = vxpose.xlu0.b32.cont [5/16] 0.0, 128
  %1664 = vxpose.xlu0.b32.cont [6/16] 0.0, 128
  %1665 = vxpose.xlu0.b32.cont [7/16] 0.0, 128
  %1666 = vxpose.xlu0.b32.cont [8/16] 0.0, 128
  %1667 = vxpose.xlu0.b32.cont [9/16] 0.0, 128
  %1668 = vxpose.xlu0.b32.cont [10/16] 0.0, 128
  %1669 = vxpose.xlu0.b32.cont [11/16] 0.0, 128
  %1670 = vxpose.xlu0.b32.cont [12/16] 0.0, 128
  %1671 = vxpose.xlu0.b32.cont [13/16] 0.0, 128
  %1672 = vxpose.xlu0.b32.cont [14/16] 0.0, 128
  %1673 = vxpose.xlu0.b32.cont [15/16] 0.0, 128
  %1674 = vxpose.xlu0.b32.end [16/16] 0.0, 128
  %v1675 = vpop.trf.xlu0
  %v1676 = vpop.trf.xlu0
  %v1677 = vpop.trf.xlu0
  %v1678 = vpop.trf.xlu0
  %v1679 = vpop.trf.xlu0
  %v1680 = vpop.trf.xlu0
  %v1681 = vpop.trf.xlu0
  %v1682 = vpop.trf.xlu0
  %v1683 = vpop.trf.xlu0
  %v1684 = vpop.trf.xlu0
  %v1685 = vpop.trf.xlu0
  %v1686 = vpop.trf.xlu0
  %v1687 = vpop.trf.xlu0
  %v1688 = vpop.trf.xlu0
  %v1689 = vpop.trf.xlu0
  %v1690 = vpop.trf.xlu0
  %v1691 = vsel %vm848, %v1643, -inf
  %v1692 = vsel %vm848, %v1645, -inf
  %v1693 = vmax.f32 %v1691, %v1692
  %v1694 = vsel %vm848, %v1644, -inf
  %v1695 = vsel %vm848, %v1646, -inf
  %v1696 = vmax.f32 %v1694, %v1695
  %v1697 = vsel %vm848, %v1647, -inf
  %v1698 = vsel %vm848, %v1649, -inf
  %v1699 = vmax.f32 %v1697, %v1698
  %v1700 = vsel %vm848, %v1648, -inf
  %v1701 = vsel %vm848, %v1650, -inf
  %v1702 = vmax.f32 %v1700, %v1701
  %v1703 = vsel %vm848, %v1651, -inf
  %v1704 = vsel %vm848, %v1653, -inf
  %v1705 = vmax.f32 %v1703, %v1704
  %v1706 = vsel %vm848, %v1652, -inf
  %v1707 = vsel %vm848, %v1654, -inf
  %v1708 = vmax.f32 %v1706, %v1707
  %v1709 = vsel %vm848, %v1655, -inf
  %v1710 = vsel %vm848, %v1657, -inf
  %v1711 = vmax.f32 %v1709, %v1710
  %v1712 = vsel %vm848, %v1656, -inf
  %v1713 = vsel %vm848, %v1658, -inf
  %v1714 = vmax.f32 %v1712, %v1713
  %v1715 = vsel %vm848, %v1675, -inf
  %v1716 = vsel %vm848, %v1677, -inf
  %v1717 = vmax.f32 %v1715, %v1716
  %v1718 = vsel %vm848, %v1676, -inf
  %v1719 = vsel %vm848, %v1678, -inf
  %v1720 = vmax.f32 %v1718, %v1719
  %v1721 = vsel %vm848, %v1679, -inf
  %v1722 = vsel %vm848, %v1681, -inf
  %v1723 = vmax.f32 %v1721, %v1722
  %v1724 = vsel %vm848, %v1680, -inf
  %v1725 = vsel %vm848, %v1682, -inf
  %v1726 = vmax.f32 %v1724, %v1725
  %v1727 = vsel %vm848, %v1683, -inf
  %v1728 = vsel %vm848, %v1685, -inf
  %v1729 = vmax.f32 %v1727, %v1728
  %v1730 = vsel %vm848, %v1684, -inf
  %v1731 = vsel %vm848, %v1686, -inf
  %v1732 = vmax.f32 %v1730, %v1731
  %v1733 = vsel %vm848, %v1687, -inf
  %v1734 = vsel %vm848, %v1689, -inf
  %v1735 = vmax.f32 %v1733, %v1734
  %v1736 = vsel %vm848, %v1688, -inf
  %v1737 = vsel %vm848, %v1690, -inf
  %v1738 = vmax.f32 %v1736, %v1737
  %v1755 = vrot.slane %v1693, 2
  %v1756 = vrot.slane %v1693, 4
  %v1757 = vrot.slane %v1693, 6
  %v1758 = vrot.slane %v1696, 2
  %v1759 = vrot.slane %v1696, 4
  %v1760 = vrot.slane %v1696, 6
  %v1761 = vrot.slane %v1699, 2
  %v1762 = vrot.slane %v1699, 4
  %v1763 = vrot.slane %v1699, 6
  %v1764 = vrot.slane %v1702, 2
  %v1765 = vrot.slane %v1702, 4
  %v1766 = vrot.slane %v1702, 6
  %v1767 = vrot.slane %v1705, 2
  %v1768 = vrot.slane %v1705, 4
  %v1769 = vrot.slane %v1705, 6
  %v1770 = vrot.slane %v1708, 2
  %v1771 = vrot.slane %v1708, 4
  %v1772 = vrot.slane %v1708, 6
  %v1773 = vrot.slane %v1711, 2
  %v1774 = vrot.slane %v1711, 4
  %v1775 = vrot.slane %v1711, 6
  %v1776 = vrot.slane %v1714, 2
  %v1777 = vrot.slane %v1714, 4
  %v1778 = vrot.slane %v1714, 6
  %v1779 = vrot.slane %v1717, 2
  %v1780 = vrot.slane %v1717, 4
  %v1781 = vrot.slane %v1717, 6
  %v1782 = vrot.slane %v1720, 2
  %v1783 = vrot.slane %v1720, 4
  %v1784 = vrot.slane %v1720, 6
  %v1785 = vrot.slane %v1723, 2
  %v1786 = vrot.slane %v1723, 4
  %v1787 = vrot.slane %v1723, 6
  %v1788 = vrot.slane %v1726, 2
  %v1789 = vrot.slane %v1726, 4
  %v1790 = vrot.slane %v1726, 6
  %v1791 = vrot.slane %v1729, 2
  %v1792 = vrot.slane %v1729, 4
  %v1793 = vrot.slane %v1729, 6
  %v1794 = vrot.slane %v1732, 2
  %v1795 = vrot.slane %v1732, 4
  %v1796 = vrot.slane %v1732, 6
  %v1797 = vrot.slane %v1735, 2
  %v1798 = vrot.slane %v1735, 4
  %v1799 = vrot.slane %v1735, 6
  %v1800 = vrot.slane %v1738, 2
  %v1801 = vrot.slane %v1738, 4
  %v1802 = vrot.slane %v1738, 6
  %v1851 = vsel %vm1009, %v1693, -inf
  %v1852 = vrot.slane %v1851, 4
  %v1853 = vmax.f32 %v1851, %v1852
  %v1854 = vrot.slane %v1853, 2
  %v1855 = vmax.f32 %v1853, %v1854
  %v1856 = vrot.slane %v1855, 1
  %v1857 = vmax.f32 %v1855, %v1856
  %v1858 = vsel %vm1009, %v1755, -inf
  %v1859 = vrot.slane %v1858, 4
  %v1860 = vmax.f32 %v1858, %v1859
  %v1861 = vrot.slane %v1860, 2
  %v1862 = vmax.f32 %v1860, %v1861
  %v1863 = vrot.slane %v1862, 1
  %v1864 = vmax.f32 %v1862, %v1863
  %v1865 = vsel %vm1009, %v1756, -inf
  %v1866 = vrot.slane %v1865, 4
  %v1867 = vmax.f32 %v1865, %v1866
  %v1868 = vrot.slane %v1867, 2
  %v1869 = vmax.f32 %v1867, %v1868
  %v1870 = vrot.slane %v1869, 1
  %v1871 = vmax.f32 %v1869, %v1870
  %v1872 = vsel %vm1009, %v1757, -inf
  %v1873 = vrot.slane %v1872, 4
  %v1874 = vmax.f32 %v1872, %v1873
  %v1875 = vrot.slane %v1874, 2
  %v1876 = vmax.f32 %v1874, %v1875
  %v1877 = vrot.slane %v1876, 1
  %v1878 = vmax.f32 %v1876, %v1877
  %v1879 = vsel %vm1009, %v1696, -inf
  %v1880 = vrot.slane %v1879, 4
  %v1881 = vmax.f32 %v1879, %v1880
  %v1882 = vrot.slane %v1881, 2
  %v1883 = vmax.f32 %v1881, %v1882
  %v1884 = vrot.slane %v1883, 1
  %v1885 = vmax.f32 %v1883, %v1884
  %v1886 = vsel %vm1009, %v1758, -inf
  %v1887 = vrot.slane %v1886, 4
  %v1888 = vmax.f32 %v1886, %v1887
  %v1889 = vrot.slane %v1888, 2
  %v1890 = vmax.f32 %v1888, %v1889
  %v1891 = vrot.slane %v1890, 1
  %v1892 = vmax.f32 %v1890, %v1891
  %v1893 = vsel %vm1009, %v1759, -inf
  %v1894 = vrot.slane %v1893, 4
  %v1895 = vmax.f32 %v1893, %v1894
  %v1896 = vrot.slane %v1895, 2
  %v1897 = vmax.f32 %v1895, %v1896
  %v1898 = vrot.slane %v1897, 1
  %v1899 = vmax.f32 %v1897, %v1898
  %v1900 = vsel %vm1009, %v1760, -inf
  %v1901 = vrot.slane %v1900, 4
  %v1902 = vmax.f32 %v1900, %v1901
  %v1903 = vrot.slane %v1902, 2
  %v1904 = vmax.f32 %v1902, %v1903
  %v1905 = vrot.slane %v1904, 1
  %v1906 = vmax.f32 %v1904, %v1905
  %v1907 = vsel %vm1009, %v1699, -inf
  %v1908 = vrot.slane %v1907, 4
  %v1909 = vmax.f32 %v1907, %v1908
  %v1910 = vrot.slane %v1909, 2
  %v1911 = vmax.f32 %v1909, %v1910
  %v1912 = vrot.slane %v1911, 1
  %v1913 = vmax.f32 %v1911, %v1912
  %v1914 = vsel %vm1009, %v1761, -inf
  %v1915 = vrot.slane %v1914, 4
  %v1916 = vmax.f32 %v1914, %v1915
  %v1917 = vrot.slane %v1916, 2
  %v1918 = vmax.f32 %v1916, %v1917
  %v1919 = vrot.slane %v1918, 1
  %v1920 = vmax.f32 %v1918, %v1919
  %v1921 = vsel %vm1009, %v1762, -inf
  %v1922 = vrot.slane %v1921, 4
  %v1923 = vmax.f32 %v1921, %v1922
  %v1924 = vrot.slane %v1923, 2
  %v1925 = vmax.f32 %v1923, %v1924
  %v1926 = vrot.slane %v1925, 1
  %v1927 = vmax.f32 %v1925, %v1926
  %v1928 = vsel %vm1009, %v1763, -inf
  %v1929 = vrot.slane %v1928, 4
  %v1930 = vmax.f32 %v1928, %v1929
  %v1931 = vrot.slane %v1930, 2
  %v1932 = vmax.f32 %v1930, %v1931
  %v1933 = vrot.slane %v1932, 1
  %v1934 = vmax.f32 %v1932, %v1933
  %v1935 = vsel %vm1009, %v1702, -inf
  %v1936 = vrot.slane %v1935, 4
  %v1937 = vmax.f32 %v1935, %v1936
  %v1938 = vrot.slane %v1937, 2
  %v1939 = vmax.f32 %v1937, %v1938
  %v1940 = vrot.slane %v1939, 1
  %v1941 = vmax.f32 %v1939, %v1940
  %v1942 = vsel %vm1009, %v1764, -inf
  %v1943 = vrot.slane %v1942, 4
  %v1944 = vmax.f32 %v1942, %v1943
  %v1945 = vrot.slane %v1944, 2
  %v1946 = vmax.f32 %v1944, %v1945
  %v1947 = vrot.slane %v1946, 1
  %v1948 = vmax.f32 %v1946, %v1947
  %v1949 = vsel %vm1009, %v1765, -inf
  %v1950 = vrot.slane %v1949, 4
  %v1951 = vmax.f32 %v1949, %v1950
  %v1952 = vrot.slane %v1951, 2
  %v1953 = vmax.f32 %v1951, %v1952
  %v1954 = vrot.slane %v1953, 1
  %v1955 = vmax.f32 %v1953, %v1954
  %v1956 = vsel %vm1009, %v1766, -inf
  %v1957 = vrot.slane %v1956, 4
  %v1958 = vmax.f32 %v1956, %v1957
  %v1959 = vrot.slane %v1958, 2
  %v1960 = vmax.f32 %v1958, %v1959
  %v1961 = vrot.slane %v1960, 1
  %v1962 = vmax.f32 %v1960, %v1961
  %v1963 = vsel %vm1009, %v1705, -inf
  %v1964 = vrot.slane %v1963, 4
  %v1965 = vmax.f32 %v1963, %v1964
  %v1966 = vrot.slane %v1965, 2
  %v1967 = vmax.f32 %v1965, %v1966
  %v1968 = vrot.slane %v1967, 1
  %v1969 = vmax.f32 %v1967, %v1968
  %v1970 = vsel %vm1009, %v1767, -inf
  %v1971 = vrot.slane %v1970, 4
  %v1972 = vmax.f32 %v1970, %v1971
  %v1973 = vrot.slane %v1972, 2
  %v1974 = vmax.f32 %v1972, %v1973
  %v1975 = vrot.slane %v1974, 1
  %v1976 = vmax.f32 %v1974, %v1975
  %v1977 = vsel %vm1009, %v1768, -inf
  %v1978 = vrot.slane %v1977, 4
  %v1979 = vmax.f32 %v1977, %v1978
  %v1980 = vrot.slane %v1979, 2
  %v1981 = vmax.f32 %v1979, %v1980
  %v1982 = vrot.slane %v1981, 1
  %v1983 = vmax.f32 %v1981, %v1982
  %v1984 = vsel %vm1009, %v1769, -inf
  %v1985 = vrot.slane %v1984, 4
  %v1986 = vmax.f32 %v1984, %v1985
  %v1987 = vrot.slane %v1986, 2
  %v1988 = vmax.f32 %v1986, %v1987
  %v1989 = vrot.slane %v1988, 1
  %v1990 = vmax.f32 %v1988, %v1989
  %v1991 = vsel %vm1009, %v1708, -inf
  %v1992 = vrot.slane %v1991, 4
  %v1993 = vmax.f32 %v1991, %v1992
  %v1994 = vrot.slane %v1993, 2
  %v1995 = vmax.f32 %v1993, %v1994
  %v1996 = vrot.slane %v1995, 1
  %v1997 = vmax.f32 %v1995, %v1996
  %v1998 = vsel %vm1009, %v1770, -inf
  %v1999 = vrot.slane %v1998, 4
  %v2000 = vmax.f32 %v1998, %v1999
  %v2001 = vrot.slane %v2000, 2
  %v2002 = vmax.f32 %v2000, %v2001
  %v2003 = vrot.slane %v2002, 1
  %v2004 = vmax.f32 %v2002, %v2003
  %v2005 = vsel %vm1009, %v1771, -inf
  %v2006 = vrot.slane %v2005, 4
  %v2007 = vmax.f32 %v2005, %v2006
  %v2008 = vrot.slane %v2007, 2
  %v2009 = vmax.f32 %v2007, %v2008
  %v2010 = vrot.slane %v2009, 1
  %v2011 = vmax.f32 %v2009, %v2010
  %v2012 = vsel %vm1009, %v1772, -inf
  %v2013 = vrot.slane %v2012, 4
  %v2014 = vmax.f32 %v2012, %v2013
  %v2015 = vrot.slane %v2014, 2
  %v2016 = vmax.f32 %v2014, %v2015
  %v2017 = vrot.slane %v2016, 1
  %v2018 = vmax.f32 %v2016, %v2017
  %v2019 = vsel %vm1009, %v1711, -inf
  %v2020 = vrot.slane %v2019, 4
  %v2021 = vmax.f32 %v2019, %v2020
  %v2022 = vrot.slane %v2021, 2
  %v2023 = vmax.f32 %v2021, %v2022
  %v2024 = vrot.slane %v2023, 1
  %v2025 = vmax.f32 %v2023, %v2024
  %v2026 = vsel %vm1009, %v1773, -inf
  %v2027 = vrot.slane %v2026, 4
  %v2028 = vmax.f32 %v2026, %v2027
  %v2029 = vrot.slane %v2028, 2
  %v2030 = vmax.f32 %v2028, %v2029
  %v2031 = vrot.slane %v2030, 1
  %v2032 = vmax.f32 %v2030, %v2031
  %v2033 = vsel %vm1009, %v1774, -inf
  %v2034 = vrot.slane %v2033, 4
  %v2035 = vmax.f32 %v2033, %v2034
  %v2036 = vrot.slane %v2035, 2
  %v2037 = vmax.f32 %v2035, %v2036
  %v2038 = vrot.slane %v2037, 1
  %v2039 = vmax.f32 %v2037, %v2038
  %v2040 = vsel %vm1009, %v1775, -inf
  %v2041 = vrot.slane %v2040, 4
  %v2042 = vmax.f32 %v2040, %v2041
  %v2043 = vrot.slane %v2042, 2
  %v2044 = vmax.f32 %v2042, %v2043
  %v2045 = vrot.slane %v2044, 1
  %v2046 = vmax.f32 %v2044, %v2045
  %v2047 = vsel %vm1009, %v1714, -inf
  %v2048 = vrot.slane %v2047, 4
  %v2049 = vmax.f32 %v2047, %v2048
  %v2050 = vrot.slane %v2049, 2
  %v2051 = vmax.f32 %v2049, %v2050
  %v2052 = vrot.slane %v2051, 1
  %v2053 = vmax.f32 %v2051, %v2052
  %v2054 = vsel %vm1009, %v1776, -inf
  %v2055 = vrot.slane %v2054, 4
  %v2056 = vmax.f32 %v2054, %v2055
  %v2057 = vrot.slane %v2056, 2
  %v2058 = vmax.f32 %v2056, %v2057
  %v2059 = vrot.slane %v2058, 1
  %v2060 = vmax.f32 %v2058, %v2059
  %v2061 = vsel %vm1009, %v1777, -inf
  %v2062 = vrot.slane %v2061, 4
  %v2063 = vmax.f32 %v2061, %v2062
  %v2064 = vrot.slane %v2063, 2
  %v2065 = vmax.f32 %v2063, %v2064
  %v2066 = vrot.slane %v2065, 1
  %v2067 = vmax.f32 %v2065, %v2066
  %v2068 = vsel %vm1009, %v1778, -inf
  %v2069 = vrot.slane %v2068, 4
  %v2070 = vmax.f32 %v2068, %v2069
  %v2071 = vrot.slane %v2070, 2
  %v2072 = vmax.f32 %v2070, %v2071
  %v2073 = vrot.slane %v2072, 1
  %v2074 = vmax.f32 %v2072, %v2073
  %v2075 = vsel %vm1009, %v1717, -inf
  %v2076 = vrot.slane %v2075, 4
  %v2077 = vmax.f32 %v2075, %v2076
  %v2078 = vrot.slane %v2077, 2
  %v2079 = vmax.f32 %v2077, %v2078
  %v2080 = vrot.slane %v2079, 1
  %v2081 = vmax.f32 %v2079, %v2080
  %v2082 = vsel %vm1009, %v1779, -inf
  %v2083 = vrot.slane %v2082, 4
  %v2084 = vmax.f32 %v2082, %v2083
  %v2085 = vrot.slane %v2084, 2
  %v2086 = vmax.f32 %v2084, %v2085
  %v2087 = vrot.slane %v2086, 1
  %v2088 = vmax.f32 %v2086, %v2087
  %v2089 = vsel %vm1009, %v1780, -inf
  %v2090 = vrot.slane %v2089, 4
  %v2091 = vmax.f32 %v2089, %v2090
  %v2092 = vrot.slane %v2091, 2
  %v2093 = vmax.f32 %v2091, %v2092
  %v2094 = vrot.slane %v2093, 1
  %v2095 = vmax.f32 %v2093, %v2094
  %v2096 = vsel %vm1009, %v1781, -inf
  %v2097 = vrot.slane %v2096, 4
  %v2098 = vmax.f32 %v2096, %v2097
  %v2099 = vrot.slane %v2098, 2
  %v2100 = vmax.f32 %v2098, %v2099
  %v2101 = vrot.slane %v2100, 1
  %v2102 = vmax.f32 %v2100, %v2101
  %v2103 = vsel %vm1009, %v1720, -inf
  %v2104 = vrot.slane %v2103, 4
  %v2105 = vmax.f32 %v2103, %v2104
  %v2106 = vrot.slane %v2105, 2
  %v2107 = vmax.f32 %v2105, %v2106
  %v2108 = vrot.slane %v2107, 1
  %v2109 = vmax.f32 %v2107, %v2108
  %v2110 = vsel %vm1009, %v1782, -inf
  %v2111 = vrot.slane %v2110, 4
  %v2112 = vmax.f32 %v2110, %v2111
  %v2113 = vrot.slane %v2112, 2
  %v2114 = vmax.f32 %v2112, %v2113
  %v2115 = vrot.slane %v2114, 1
  %v2116 = vmax.f32 %v2114, %v2115
  %v2117 = vsel %vm1009, %v1783, -inf
  %v2118 = vrot.slane %v2117, 4
  %v2119 = vmax.f32 %v2117, %v2118
  %v2120 = vrot.slane %v2119, 2
  %v2121 = vmax.f32 %v2119, %v2120
  %v2122 = vrot.slane %v2121, 1
  %v2123 = vmax.f32 %v2121, %v2122
  %v2124 = vsel %vm1009, %v1784, -inf
  %v2125 = vrot.slane %v2124, 4
  %v2126 = vmax.f32 %v2124, %v2125
  %v2127 = vrot.slane %v2126, 2
  %v2128 = vmax.f32 %v2126, %v2127
  %v2129 = vrot.slane %v2128, 1
  %v2130 = vmax.f32 %v2128, %v2129
  %v2131 = vsel %vm1009, %v1723, -inf
  %v2132 = vrot.slane %v2131, 4
  %v2133 = vmax.f32 %v2131, %v2132
  %v2134 = vrot.slane %v2133, 2
  %v2135 = vmax.f32 %v2133, %v2134
  %v2136 = vrot.slane %v2135, 1
  %v2137 = vmax.f32 %v2135, %v2136
  %v2138 = vsel %vm1009, %v1785, -inf
  %v2139 = vrot.slane %v2138, 4
  %v2140 = vmax.f32 %v2138, %v2139
  %v2141 = vrot.slane %v2140, 2
  %v2142 = vmax.f32 %v2140, %v2141
  %v2143 = vrot.slane %v2142, 1
  %v2144 = vmax.f32 %v2142, %v2143
  %v2145 = vsel %vm1009, %v1786, -inf
  %v2146 = vrot.slane %v2145, 4
  %v2147 = vmax.f32 %v2145, %v2146
  %v2148 = vrot.slane %v2147, 2
  %v2149 = vmax.f32 %v2147, %v2148
  %v2150 = vrot.slane %v2149, 1
  %v2151 = vmax.f32 %v2149, %v2150
  %v2152 = vsel %vm1009, %v1787, -inf
  %v2153 = vrot.slane %v2152, 4
  %v2154 = vmax.f32 %v2152, %v2153
  %v2155 = vrot.slane %v2154, 2
  %v2156 = vmax.f32 %v2154, %v2155
  %v2157 = vrot.slane %v2156, 1
  %v2158 = vmax.f32 %v2156, %v2157
  %v2159 = vsel %vm1009, %v1726, -inf
  %v2160 = vrot.slane %v2159, 4
  %v2161 = vmax.f32 %v2159, %v2160
  %v2162 = vrot.slane %v2161, 2
  %v2163 = vmax.f32 %v2161, %v2162
  %v2164 = vrot.slane %v2163, 1
  %v2165 = vmax.f32 %v2163, %v2164
  %v2166 = vsel %vm1009, %v1788, -inf
  %v2167 = vrot.slane %v2166, 4
  %v2168 = vmax.f32 %v2166, %v2167
  %v2169 = vrot.slane %v2168, 2
  %v2170 = vmax.f32 %v2168, %v2169
  %v2171 = vrot.slane %v2170, 1
  %v2172 = vmax.f32 %v2170, %v2171
  %v2173 = vsel %vm1009, %v1789, -inf
  %v2174 = vrot.slane %v2173, 4
  %v2175 = vmax.f32 %v2173, %v2174
  %v2176 = vrot.slane %v2175, 2
  %v2177 = vmax.f32 %v2175, %v2176
  %v2178 = vrot.slane %v2177, 1
  %v2179 = vmax.f32 %v2177, %v2178
  %v2180 = vsel %vm1009, %v1790, -inf
  %v2181 = vrot.slane %v2180, 4
  %v2182 = vmax.f32 %v2180, %v2181
  %v2183 = vrot.slane %v2182, 2
  %v2184 = vmax.f32 %v2182, %v2183
  %v2185 = vrot.slane %v2184, 1
  %v2186 = vmax.f32 %v2184, %v2185
  %v2187 = vsel %vm1009, %v1729, -inf
  %v2188 = vrot.slane %v2187, 4
  %v2189 = vmax.f32 %v2187, %v2188
  %v2190 = vrot.slane %v2189, 2
  %v2191 = vmax.f32 %v2189, %v2190
  %v2192 = vrot.slane %v2191, 1
  %v2193 = vmax.f32 %v2191, %v2192
  %v2194 = vsel %vm1009, %v1791, -inf
  %v2195 = vrot.slane %v2194, 4
  %v2196 = vmax.f32 %v2194, %v2195
  %v2197 = vrot.slane %v2196, 2
  %v2198 = vmax.f32 %v2196, %v2197
  %v2199 = vrot.slane %v2198, 1
  %v2200 = vmax.f32 %v2198, %v2199
  %v2201 = vsel %vm1009, %v1792, -inf
  %v2202 = vrot.slane %v2201, 4
  %v2203 = vmax.f32 %v2201, %v2202
  %v2204 = vrot.slane %v2203, 2
  %v2205 = vmax.f32 %v2203, %v2204
  %v2206 = vrot.slane %v2205, 1
  %v2207 = vmax.f32 %v2205, %v2206
  %v2208 = vsel %vm1009, %v1793, -inf
  %v2209 = vrot.slane %v2208, 4
  %v2210 = vmax.f32 %v2208, %v2209
  %v2211 = vrot.slane %v2210, 2
  %v2212 = vmax.f32 %v2210, %v2211
  %v2213 = vrot.slane %v2212, 1
  %v2214 = vmax.f32 %v2212, %v2213
  %v2215 = vsel %vm1009, %v1732, -inf
  %v2216 = vrot.slane %v2215, 4
  %v2217 = vmax.f32 %v2215, %v2216
  %v2218 = vrot.slane %v2217, 2
  %v2219 = vmax.f32 %v2217, %v2218
  %v2220 = vrot.slane %v2219, 1
  %v2221 = vmax.f32 %v2219, %v2220
  %v2222 = vsel %vm1009, %v1794, -inf
  %v2223 = vrot.slane %v2222, 4
  %v2224 = vmax.f32 %v2222, %v2223
  %v2225 = vrot.slane %v2224, 2
  %v2226 = vmax.f32 %v2224, %v2225
  %v2227 = vrot.slane %v2226, 1
  %v2228 = vmax.f32 %v2226, %v2227
  %v2229 = vsel %vm1009, %v1795, -inf
  %v2230 = vrot.slane %v2229, 4
  %v2231 = vmax.f32 %v2229, %v2230
  %v2232 = vrot.slane %v2231, 2
  %v2233 = vmax.f32 %v2231, %v2232
  %v2234 = vrot.slane %v2233, 1
  %v2235 = vmax.f32 %v2233, %v2234
  %v2236 = vsel %vm1009, %v1796, -inf
  %v2237 = vrot.slane %v2236, 4
  %v2238 = vmax.f32 %v2236, %v2237
  %v2239 = vrot.slane %v2238, 2
  %v2240 = vmax.f32 %v2238, %v2239
  %v2241 = vrot.slane %v2240, 1
  %v2242 = vmax.f32 %v2240, %v2241
  %v2243 = vsel %vm1009, %v1735, -inf
  %v2244 = vrot.slane %v2243, 4
  %v2245 = vmax.f32 %v2243, %v2244
  %v2246 = vrot.slane %v2245, 2
  %v2247 = vmax.f32 %v2245, %v2246
  %v2248 = vrot.slane %v2247, 1
  %v2249 = vmax.f32 %v2247, %v2248
  %v2250 = vsel %vm1009, %v1797, -inf
  %v2251 = vrot.slane %v2250, 4
  %v2252 = vmax.f32 %v2250, %v2251
  %v2253 = vrot.slane %v2252, 2
  %v2254 = vmax.f32 %v2252, %v2253
  %v2255 = vrot.slane %v2254, 1
  %v2256 = vmax.f32 %v2254, %v2255
  %v2257 = vsel %vm1009, %v1798, -inf
  %v2258 = vrot.slane %v2257, 4
  %v2259 = vmax.f32 %v2257, %v2258
  %v2260 = vrot.slane %v2259, 2
  %v2261 = vmax.f32 %v2259, %v2260
  %v2262 = vrot.slane %v2261, 1
  %v2263 = vmax.f32 %v2261, %v2262
  %v2264 = vsel %vm1009, %v1799, -inf
  %v2265 = vrot.slane %v2264, 4
  %v2266 = vmax.f32 %v2264, %v2265
  %v2267 = vrot.slane %v2266, 2
  %v2268 = vmax.f32 %v2266, %v2267
  %v2269 = vrot.slane %v2268, 1
  %v2270 = vmax.f32 %v2268, %v2269
  %v2271 = vsel %vm1009, %v1738, -inf
  %v2272 = vrot.slane %v2271, 4
  %v2273 = vmax.f32 %v2271, %v2272
  %v2274 = vrot.slane %v2273, 2
  %v2275 = vmax.f32 %v2273, %v2274
  %v2276 = vrot.slane %v2275, 1
  %v2277 = vmax.f32 %v2275, %v2276
  %v2278 = vsel %vm1009, %v1800, -inf
  %v2279 = vrot.slane %v2278, 4
  %v2280 = vmax.f32 %v2278, %v2279
  %v2281 = vrot.slane %v2280, 2
  %v2282 = vmax.f32 %v2280, %v2281
  %v2283 = vrot.slane %v2282, 1
  %v2284 = vmax.f32 %v2282, %v2283
  %v2285 = vsel %vm1009, %v1801, -inf
  %v2286 = vrot.slane %v2285, 4
  %v2287 = vmax.f32 %v2285, %v2286
  %v2288 = vrot.slane %v2287, 2
  %v2289 = vmax.f32 %v2287, %v2288
  %v2290 = vrot.slane %v2289, 1
  %v2291 = vmax.f32 %v2289, %v2290
  %v2292 = vsel %vm1009, %v1802, -inf
  %v2293 = vrot.slane %v2292, 4
  %v2294 = vmax.f32 %v2292, %v2293
  %v2295 = vrot.slane %v2294, 2
  %v2296 = vmax.f32 %v2294, %v2295
  %v2297 = vrot.slane %v2296, 1
  %v2298 = vmax.f32 %v2296, %v2297
  %v2363 = vsel %vm1522, %v1864, %v1857
  %v2364 = vsel %vm1524, %v1871, %v2363
  %v2365 = vsel %vm1526, %v1878, %v2364
  %v2366 = vsel %vm1528, %v1885, %v2365
  %v2367 = vsel %vm1530, %v1892, %v2366
  %v2368 = vsel %vm1532, %v1899, %v2367
  %v2369 = vsel %vm1534, %v1906, %v2368
  %v2370 = vsel %vm1522, %v1920, %v1913
  %v2371 = vsel %vm1524, %v1927, %v2370
  %v2372 = vsel %vm1526, %v1934, %v2371
  %v2373 = vsel %vm1528, %v1941, %v2372
  %v2374 = vsel %vm1530, %v1948, %v2373
  %v2375 = vsel %vm1532, %v1955, %v2374
  %v2376 = vsel %vm1534, %v1962, %v2375
  %v2377 = vsel %vm1522, %v1976, %v1969
  %v2378 = vsel %vm1524, %v1983, %v2377
  %v2379 = vsel %vm1526, %v1990, %v2378
  %v2380 = vsel %vm1528, %v1997, %v2379
  %v2381 = vsel %vm1530, %v2004, %v2380
  %v2382 = vsel %vm1532, %v2011, %v2381
  %v2383 = vsel %vm1534, %v2018, %v2382
  %v2384 = vsel %vm1522, %v2032, %v2025
  %v2385 = vsel %vm1524, %v2039, %v2384
  %v2386 = vsel %vm1526, %v2046, %v2385
  %v2387 = vsel %vm1528, %v2053, %v2386
  %v2388 = vsel %vm1530, %v2060, %v2387
  %v2389 = vsel %vm1532, %v2067, %v2388
  %v2390 = vsel %vm1534, %v2074, %v2389
  %v2391 = vsel %vm1522, %v2088, %v2081
  %v2392 = vsel %vm1524, %v2095, %v2391
  %v2393 = vsel %vm1526, %v2102, %v2392
  %v2394 = vsel %vm1528, %v2109, %v2393
  %v2395 = vsel %vm1530, %v2116, %v2394
  %v2396 = vsel %vm1532, %v2123, %v2395
  %v2397 = vsel %vm1534, %v2130, %v2396
  %v2398 = vsel %vm1522, %v2144, %v2137
  %v2399 = vsel %vm1524, %v2151, %v2398
  %v2400 = vsel %vm1526, %v2158, %v2399
  %v2401 = vsel %vm1528, %v2165, %v2400
  %v2402 = vsel %vm1530, %v2172, %v2401
  %v2403 = vsel %vm1532, %v2179, %v2402
  %v2404 = vsel %vm1534, %v2186, %v2403
  %v2405 = vsel %vm1522, %v2200, %v2193
  %v2406 = vsel %vm1524, %v2207, %v2405
  %v2407 = vsel %vm1526, %v2214, %v2406
  %v2408 = vsel %vm1528, %v2221, %v2407
  %v2409 = vsel %vm1530, %v2228, %v2408
  %v2410 = vsel %vm1532, %v2235, %v2409
  %v2411 = vsel %vm1534, %v2242, %v2410
  %v2412 = vsel %vm1522, %v2256, %v2249
  %v2413 = vsel %vm1524, %v2263, %v2412
  %v2414 = vsel %vm1526, %v2270, %v2413
  %v2415 = vsel %vm1528, %v2277, %v2414
  %v2416 = vsel %vm1530, %v2284, %v2415
  %v2417 = vsel %vm1532, %v2291, %v2416
  %v2418 = vsel %vm1534, %v2298, %v2417
  %2427 = vxpose.xlu0.b32.start [1/16] %v2369, 128
  %2428 = vxpose.xlu0.b32.cont [2/16] %v2376, 128
  %2429 = vxpose.xlu0.b32.cont [3/16] %v2383, 128
  %2430 = vxpose.xlu0.b32.cont [4/16] %v2390, 128
  %2431 = vxpose.xlu0.b32.cont [5/16] %v2397, 128
  %2432 = vxpose.xlu0.b32.cont [6/16] %v2404, 128
  %2433 = vxpose.xlu0.b32.cont [7/16] %v2411, 128
  %2434 = vxpose.xlu0.b32.cont [8/16] %v2418, 128
  %2435 = vxpose.xlu0.b32.cont [9/16] 0.0, 128
  %2436 = vxpose.xlu0.b32.cont [10/16] 0.0, 128
  %2437 = vxpose.xlu0.b32.cont [11/16] 0.0, 128
  %2438 = vxpose.xlu0.b32.cont [12/16] 0.0, 128
  %2439 = vxpose.xlu0.b32.cont [13/16] 0.0, 128
  %2440 = vxpose.xlu0.b32.cont [14/16] 0.0, 128
  %2441 = vxpose.xlu0.b32.cont [15/16] 0.0, 128
  %2442 = vxpose.xlu0.b32.end [16/16] 0.0, 128
  %v2443 = vpop.trf.xlu0
  %v2444 = vpop.trf.xlu0
  %v2445 = vpop.trf.xlu0
  %v2446 = vpop.trf.xlu0
  %v2447 = vpop.trf.xlu0
  %v2448 = vpop.trf.xlu0
  %v2449 = vpop.trf.xlu0
  %v2450 = vpop.trf.xlu0
  %v2451 = vpop.trf.xlu0
  %v2452 = vpop.trf.xlu0
  %v2453 = vpop.trf.xlu0
  %v2454 = vpop.trf.xlu0
  %v2455 = vpop.trf.xlu0
  %v2456 = vpop.trf.xlu0
  %v2457 = vpop.trf.xlu0
  %v2458 = vpop.trf.xlu0
  %s2459 = scalar_lea.vmem %s7, 8
  %2460 = vst.msk [vmem:[%s2459] sm:$0xff] %vm1625, %v2443
  // Predicated region
  $region30: #{downsample_block.1} parent=0 // pred_check
    _
  $region31: #{downsample_block.1} parent=0 // pred_check_branch
    %2462 = sbr.rel (0) target = $region33
  $region32: #{downsample_block.1} parent=0 // pred_region
    _
  $region33: #{downsample_block.1} parent=0 // pred_fallthru
    _
  // Predicated region
  $region34: #{downsample_block.1} parent=0 // pred_check
    _
  $region35: #{downsample_block.1} parent=0 // pred_check_branch
    %2464 = sbr.rel (0) target = $region37
  $region36: #{downsample_block.1} parent=0 // pred_region
    _
  $region37: #{downsample_block.1} parent=0 // pred_fallthru
    _
  // Predicated region
  $region38: #{downsample_block.1} parent=0 // pred_check
    _
  $region39: #{downsample_block.1} parent=0 // pred_check_branch
    %2466 = sbr.rel (0) target = $region41
  $region40: #{downsample_block.1} parent=0 // pred_region
    _
  $region41: #{downsample_block.1} parent=0 // pred_fallthru
    _
  // Predicated region
  $region42: #{downsample_block.1} parent=0 // pred_check
    _
  $region43: #{downsample_block.1} parent=0 // pred_check_branch
    %2468 = sbr.rel (0) target = $region45
  $region44: #{downsample_block.1} parent=0 // pred_region
    _
  $region45: #{downsample_block.1} parent=0 // pred_fallthru
    _

</llo_original>
